<compile_context>
chip_gen: v6e
topology: v6e:2x2x1
jax: 0.10.0
libtpu: 0.0.40
codegen_flags: <defaults>
</compile_context>

<pallas_src>
import functools
import math

import jax
import jax.numpy as jnp
from jax.experimental import pallas as pl
from jax.experimental.pallas import tpu as pltpu

LN_EPS = 1e-5
_N_SIDE_ROWS = 9  # bqkv, bo, wg, b1, b2, n1w, n1b, n2w, n2b


def _encoder_kernel(mask_ref, x_ref, wqkv_ref, wo_ref, w1_ref, w2_ref, side_ref,
                    out_ref, x_sc, *, nhead):
    """One grid step = (one batch tile) x (one transformer layer)."""
    layer = pl.program_id(1)

    # Load fresh activations for this batch tile at layer 0; afterwards the
    # residual stream lives in VMEM scratch across the whole layer axis.
    @pl.when(layer == 0)
    def _():
        x_sc[...] = x_ref[...]

    BT, T, D = x_sc.shape
    F = w1_ref.shape[-1]
    dh = D // nhead
    R = BT * T
    bf16 = jnp.bfloat16

    x3 = x_sc[...]                       # (BT, T, D) f32 residual stream
    xf = x3.reshape(R, D)                # row-dense (BT*T, D) slab
    xb = xf.astype(bf16)                 # single hoisted cast for QKV matmul

    # Packed small parameters for this layer: (9, W) f32, sliced once.
    side = side_ref[0]
    bqkv = side[0:1, :3 * D]             # bq already pre-scaled by 1/sqrt(dh)
    bo = side[1:2, :D]
    wg = side[2:3, :D]
    b1 = side[3:4, :F]
    b2 = side[4:5, :D]
    n1w, n1b = side[5:6, :D], side[6:7, :D]
    n2w, n2b = side[7:8, :D], side[8:9, :D]

    # Key-padding mask, hoisted once per layer: (BT, 1, T) bool.
    key_valid = mask_ref[...] > 0.5
    neg = jnp.float32(-1e30)

    def layernorm(v, w, b):
        mu = jnp.mean(v, axis=-1, keepdims=True)
        var = jnp.mean((v - mu) ** 2, axis=-1, keepdims=True)
        return (v - mu) * jax.lax.rsqrt(var + LN_EPS) * w + b

    # ---- multi-head self attention (key-padding mask) ----
    # Fused QKV: one (R,D)x(D,3D) MXU matmul, f32 accumulation.
    qkv = jnp.dot(xb, wqkv_ref[0], preferred_element_type=jnp.float32) + bqkv
    q3 = qkv[:, :D].reshape(BT, T, D).astype(bf16)        # scale folded in Wq
    k3 = qkv[:, D:2 * D].reshape(BT, T, D).astype(bf16)
    v3 = qkv[:, 2 * D:].reshape(BT, T, D).astype(bf16)

    # TODO(synk): a single head-batched einsum ('bqhd,bkhd->bhqk') would need a
    # multi-batch-dim dot_general lowering; keep a static per-head unroll
    # (nhead is small) with all bf16 casts hoisted out of the loop.
    head_outs = []
    for h in range(nhead):
        sl = slice(h * dh, (h + 1) * dh)
        s = jnp.einsum('bqd,bkd->bqk', q3[:, :, sl], k3[:, :, sl],
                       preferred_element_type=jnp.float32)  # (BT, T, T) f32
        s = jnp.where(key_valid, s, neg)                     # mask in f32
        s = s - jnp.max(s, axis=-1, keepdims=True)
        p = jnp.exp(s)
        p = p * pl.reciprocal(jnp.sum(p, axis=-1, keepdims=True), approx=True)
        head_outs.append(
            jnp.einsum('bqk,bkd->bqd', p.astype(bf16), v3[:, :, sl],
                       preferred_element_type=jnp.float32))  # (BT, T, dh)
    attn = jnp.concatenate(head_outs, axis=-1).reshape(R, D).astype(bf16)
    attn = jnp.dot(attn, wo_ref[0], preferred_element_type=jnp.float32) + bo

    # residual + post-LN 1 (f32)
    x1 = layernorm(xf + attn, n1w, n1b)

    # ---- gated feed-forward (gate as a VPU reduction, not an N=1 matmul) ----
    g = jax.nn.sigmoid(jnp.sum(x1 * wg, axis=-1, keepdims=True))      # (R, 1)
    h1 = jnp.dot(x1.astype(bf16), w1_ref[0],
                 preferred_element_type=jnp.float32) + b1             # (R, F)
    h1 = jnp.maximum(h1 * g, 0.0).astype(bf16)   # relu(gated); dropout = 0
    h2 = jnp.dot(h1, w2_ref[0], preferred_element_type=jnp.float32) + b2

    # residual + post-LN 2 (f32)
    x2 = layernorm(x1 + h2, n2w, n2b)

    new_x = x2.reshape(BT, T, D)
    x_sc[...] = new_x                            # carry to the next layer

    @pl.when(layer == pl.num_programs(1) - 1)
    def _():
        out_ref[...] = new_x.astype(out_ref.dtype)


def _tile_work_bytes(bb, T, D, F):
    """Rough per-tile f32/bf16 working-set estimate (for block_b / VMEM sizing)."""
    R = bb * T
    return (R * D * 4 * 6            # residual, attn out, x1, x2 + bf16 copies
            + R * 3 * D * 6          # fused qkv (f32) + bf16 views
            + R * F * 6              # FFN intermediate f32 + bf16
            + bb * T * T * 8)        # score / prob tiles


def transtab_encoder_forward(embedding, attention_mask, stacked_params, nhead,
                             block_b=None, out_dtype=jnp.float32):
    """TransTabEncoder.forward: num_layer sequential TransTabTransformerLayers."""
    bs, T, D = embedding.shape
    assert D % nhead == 0
    L = stacked_params['wqkv_t'].shape[0]
    F = stacked_params['w1_t'].shape[-1]
    W = stacked_params['side'].shape[-1]

    x = embedding.astype(jnp.float32)
    if attention_mask is None:
        attention_mask = jnp.ones((bs, T), jnp.float32)
    mask = attention_mask.astype(jnp.float32)

    if block_b is None:
        # Target ~512 rows per matmul slab (measured ~85% of HBM roofline for
        # 512-wide tiles); large tiles also minimize nb and hence the nb*L
        # re-read of layer weights from HBM. Shrink until the working set fits
        # a conservative (v7x-safe, 64 MiB VMEM) budget.
        block_b = max(1, min(bs, max(1, 512 // T)))
        budget = 40 * 1024 * 1024
        while block_b > 1 and _tile_work_bytes(block_b, T, D, F) > budget:
            block_b = (block_b + 1) // 2

    pad = (-bs) % block_b
    if pad:
        x = jnp.concatenate([x, jnp.zeros((pad, T, D), jnp.float32)], axis=0)
        mask = jnp.concatenate([mask, jnp.zeros((pad, T), jnp.float32)], axis=0)
    bsp = bs + pad
    nb = bsp // block_b
    mask3 = mask.reshape(bsp, 1, T)

    # VMEM limit derived from actual tile sizes (double-buffered weights + I/O
    # + working set), clamped to stay valid on every TPU generation.
    weight_bytes = 2 * 2 * (D * 3 * D + D * D + 2 * D * F)          # bf16 x2buf
    io_bytes = 2 * (2 * block_b * T * D * 4 + block_b * T * 4
                    + _N_SIDE_ROWS * W * 4)
    est = weight_bytes + io_bytes + _tile_work_bytes(block_b, T, D, F) \
        + block_b * T * D * 4                                        # scratch
    vmem_limit = int(min(96 * 1024 * 1024, max(32 * 1024 * 1024, 2 * est)))

    in_specs = [
        pl.BlockSpec((block_b, 1, T), lambda b, l: (b, 0, 0)),   # key mask
        pl.BlockSpec((block_b, T, D), lambda b, l: (b, 0, 0)),   # activations
        # Stacked (num_layer, ...) parameters: block index depends only on the
        # layer axis, so layer l+1 weights prefetch while layer l computes.
        pl.BlockSpec((1, D, 3 * D), lambda b, l: (l, 0, 0)),     # fused QKV
        pl.BlockSpec((1, D, D), lambda b, l: (l, 0, 0)),         # out proj
        pl.BlockSpec((1, D, F), lambda b, l: (l, 0, 0)),         # ffn up
        pl.BlockSpec((1, F, D), lambda b, l: (l, 0, 0)),         # ffn down
        pl.BlockSpec((1, _N_SIDE_ROWS, W), lambda b, l: (l, 0, 0)),  # packed
    ]

    kernel = functools.partial(_encoder_kernel, nhead=nhead)
    out = pl.pallas_call(
        kernel,
        out_shape=jax.ShapeDtypeStruct((bsp, T, D), out_dtype),
        grid=(nb, L),
        in_specs=in_specs,
        out_specs=pl.BlockSpec((block_b, T, D), lambda b, l: (b, 0, 0)),
        scratch_shapes=[pltpu.VMEM((block_b, T, D), jnp.float32)],
        compiler_params=pltpu.CompilerParams(
            dimension_semantics=("parallel", "arbitrary"),
            vmem_limit_bytes=vmem_limit),
    )(mask3, x, stacked_params['wqkv_t'], stacked_params['wo_t'],
      stacked_params['w1_t'], stacked_params['w2_t'], stacked_params['side'])
    return out[:bs]


def init_layer_params(key, d, ffn):
    """Deterministic synthetic parameters for one TransTabTransformerLayer
    (PyTorch layout: Linear weights are (out_features, in_features))."""
    ks = jax.random.split(key, 7)
    w = lambda k, shape: jax.random.normal(k, shape, jnp.float32) * 0.05
    z = lambda shape: jnp.zeros(shape, jnp.float32)
    o = lambda shape: jnp.ones(shape, jnp.float32)
    return dict(
        wq=w(ks[0], (d, d)), wk=w(ks[1], (d, d)), wv=w(ks[2], (d, d)),
        bq=z((1, d)), bk=z((1, d)), bv=z((1, d)),
        wo=w(ks[3], (d, d)), bo=z((1, d)),
        wg=w(ks[4], (1, d)),
        w1=w(ks[5], (ffn, d)), b1=z((1, ffn)),
        w2=w(ks[6], (d, ffn)), b2=z((1, d)),
        n1w=o((1, d)), n1b=z((1, d)),
        n2w=o((1, d)), n2b=z((1, d)),
    )


def stack_layer_params(layer_params, nhead):
    """Stack per-layer params along a leading (num_layer, ...) axis.

    * Wq|Wk|Wv are pre-transposed (contraction dim first), concatenated into a
      single (L, D, 3D) bf16 tensor, with the 1/sqrt(dh) attention scale folded
      into Wq / bq host-side (one-time preprocessing, not a per-call op).
    * All small f32 params are packed into one (L, 9, W) array:
      rows = [bqkv, bo, wg, b1, b2, n1w, n1b, n2w, n2b], W = max(3D, F).
    """
    d = layer_params[0]['wq'].shape[0]
    f = layer_params[0]['w1'].shape[0]
    scale = 1.0 / math.sqrt(d // nhead)
    W = max(3 * d, f)
    bf16 = jnp.bfloat16

    def qkv_t(p):
        return jnp.concatenate([(p['wq'] * scale).T, p['wk'].T, p['wv'].T],
                               axis=-1)                      # (D, 3D)

    def pack_side(p):
        rows = [
            jnp.concatenate([p['bq'] * scale, p['bk'], p['bv']], axis=-1),
            p['bo'], p['wg'], p['b1'], p['b2'],
            p['n1w'], p['n1b'], p['n2w'], p['n2b'],
        ]
        out = jnp.zeros((_N_SIDE_ROWS, W), jnp.float32)
        for i, r in enumerate(rows):
            out = out.at[i, :r.shape[-1]].set(r[0])
        return out

    stack = lambda fn: jnp.stack([fn(p) for p in layer_params], axis=0)
    return dict(
        wqkv_t=stack(qkv_t).astype(bf16),               # (L, D, 3D)
        wo_t=stack(lambda p: p['wo'].T).astype(bf16),   # (L, D, D)
        w1_t=stack(lambda p: p['w1'].T).astype(bf16),   # (L, D, F)
        w2_t=stack(lambda p: p['w2'].T).astype(bf16),   # (L, F, D)
        side=stack(pack_side),                          # (L, 9, W) f32
    )


def _reference_layer(x, mask, p, nhead):
    """Pure-JAX f32 reference of one TransTabTransformerLayer (post-LN)."""
    bs, T, D = x.shape
    dh = D // nhead

    def ln(v, w, b):
        mu = v.mean(-1, keepdims=True)
        var = ((v - mu) ** 2).mean(-1, keepdims=True)
        return (v - mu) / jnp.sqrt(var + LN_EPS) * w + b

    q = x @ p['wq'].T + p['bq']
    k = x @ p['wk'].T + p['bk']
    v = x @ p['wv'].T + p['bv']
    q = q.reshape(bs, T, nhead, dh).transpose(0, 2, 1, 3)
    k = k.reshape(bs, T, nhead, dh).transpose(0, 2, 1, 3)
    v = v.reshape(bs, T, nhead, dh).transpose(0, 2, 1, 3)
    s = jnp.einsum('bhqd,bhkd->bhqk', q, k) / (dh ** 0.5)
    s = jnp.where(mask[:, None, None, :] > 0.5, s, -1e30)
    pr = jax.nn.softmax(s, axis=-1)
    o = jnp.einsum('bhqk,bhkd->bhqd', pr, v).transpose(0, 2, 1, 3)
    attn = o.reshape(bs, T, D) @ p['wo'].T + p['bo']
    x = ln(x + attn, p['n1w'], p['n1b'])
    g = jax.nn.sigmoid(x @ p['wg'].T)
    h = jnp.maximum((x @ p['w1'].T + p['b1']) * g, 0.0)
    h = h @ p['w2'].T + p['b2']
    return ln(x + h, p['n2w'], p['n2b'])


if __name__ == "__main__":
    # Module-default config: TransTabEncoder(hidden_dim=128, num_layer=2,
    # num_attention_head=2, hidden_dropout_prob=0, ffn_dim=256) — hidden is a
    # multiple of 128 so every lane is live and output stores are unmasked.
    batch, num_token, hidden_dim = 2, 8, 128
    num_layer, nhead, ffn_dim = 2, 2, 256

    key = jax.random.PRNGKey(0)
    k_emb, k_params = jax.random.split(key)

    embedding = jax.random.normal(k_emb, (batch, num_token, hidden_dim),
                                  jnp.float32)
    # 1 = valid token, 0 = padding (last two tokens of batch element 1 padded)
    attention_mask = jnp.ones((batch, num_token), jnp.float32)
    attention_mask = attention_mask.at[1, 6:].set(0.0)

    layer_keys = jax.random.split(k_params, num_layer)
    layer_params = [init_layer_params(layer_keys[i], hidden_dim, ffn_dim)
                    for i in range(num_layer)]
    stacked = stack_layer_params(layer_params, nhead)

    out = transtab_encoder_forward(embedding, attention_mask, stacked, nhead)
    out = jax.block_until_ready(out)

    # Pure-JAX f32 reference (tolerance accounts for bf16 MXU matmuls with f32
    # accumulation and the approximate EUP reciprocal in the softmax divide).
    ref = embedding
    for p in layer_params:
        ref = _reference_layer(ref, attention_mask, p, nhead)

    assert out.shape == (batch, num_token, hidden_dim)
    assert bool(jnp.all(jnp.isfinite(out)))
    max_err = float(jnp.max(jnp.abs(out - ref)))
    assert max_err < 5e-2, f"max abs err vs reference: {max_err}"
    print("KERNEL_OK")
</pallas_src>

<mosaic_0001>
module attributes {stable_mosaic.version = 11 : i64} {
  func.func @_encoder_kernel(%arg0: i32, %arg1: i32, %arg2: memref<2x1x8xf32, #tpu.memory_space<vmem>>, %arg3: memref<2x8x128xf32, #tpu.memory_space<vmem>>, %arg4: memref<1x128x384xbf16, #tpu.memory_space<vmem>>, %arg5: memref<1x128x128xbf16, #tpu.memory_space<vmem>>, %arg6: memref<1x128x256xbf16, #tpu.memory_space<vmem>>, %arg7: memref<1x256x128xbf16, #tpu.memory_space<vmem>>, %arg8: memref<1x9x384xf32, #tpu.memory_space<vmem>>, %arg9: memref<2x8x128xf32, #tpu.memory_space<vmem>>, %arg10: memref<2x8x128xf32, #tpu.memory_space<vmem>>) attributes {dimension_semantics = [#tpu.dimension_semantics<parallel>, #tpu.dimension_semantics<arbitrary>], iteration_bounds = array<i64: 1, 2>, scalar_prefetch = 0 : i64, scratch_operands = 1 : i64, tpu.core_type = #tpu.core_type<tc>, window_params = [{transform_indices = @transform_0, window_bounds = array<i64: 2, 1, 8>}, {transform_indices = @transform_1, window_bounds = array<i64: 2, 8, 128>}, {transform_indices = @transform_2, window_bounds = array<i64: 1, 128, 384>}, {transform_indices = @transform_3, window_bounds = array<i64: 1, 128, 128>}, {transform_indices = @transform_4, window_bounds = array<i64: 1, 128, 256>}, {transform_indices = @transform_5, window_bounds = array<i64: 1, 256, 128>}, {transform_indices = @transform_6, window_bounds = array<i64: 1, 9, 384>}, {transform_indices = @transform_7, window_bounds = array<i64: 2, 8, 128>}]} {
    %c0_i32 = arith.constant 0 : i32
    %0 = arith.cmpi eq, %arg1, %c0_i32 : i32
    %1 = arith.extui %0 : i1 to i32
    %c0_i32_0 = arith.constant 0 : i32
    %2 = arith.cmpi ne, %1, %c0_i32_0 : i32
    scf.if %2 {
      %c0_52 = arith.constant 0 : index
      %c0_53 = arith.constant 0 : index
      %c0_54 = arith.constant 0 : index
      %158 = vector.load %arg3[%c0_52, %c0_53, %c0_54] : memref<2x8x128xf32, #tpu.memory_space<vmem>>, vector<2x8x128xf32>
      %c0_55 = arith.constant 0 : index
      %c0_56 = arith.constant 0 : index
      %c0_57 = arith.constant 0 : index
      %159 = vector.load %arg10[%c0_55, %c0_56, %c0_57] : memref<2x8x128xf32, #tpu.memory_space<vmem>>, vector<2x8x128xf32>
      tpu.vector_store %arg10[%c0_55, %c0_56, %c0_57], %158 {strides = array<i32>} : memref<2x8x128xf32, #tpu.memory_space<vmem>>, vector<2x8x128xf32>,
    } else {
    }
    %c0 = arith.constant 0 : index
    %c0_1 = arith.constant 0 : index
    %c0_2 = arith.constant 0 : index
    %3 = vector.load %arg10[%c0, %c0_1, %c0_2] : memref<2x8x128xf32, #tpu.memory_space<vmem>>, vector<2x8x128xf32>
    %4 = vector.shape_cast %3 : vector<2x8x128xf32> to vector<16x128xf32>
    %5 = arith.truncf %4 : vector<16x128xf32> to vector<16x128xbf16>
    %c0_3 = arith.constant 0 : index
    %c0_4 = arith.constant 0 : index
    %c0_5 = arith.constant 0 : index
    %6 = vector.load %arg8[%c0_3, %c0_4, %c0_5] : memref<1x9x384xf32, #tpu.memory_space<vmem>>, vector<1x9x384xf32>
    %7 = vector.shape_cast %6 : vector<1x9x384xf32> to vector<9x384xf32>
    %8 = vector.extract_strided_slice %7 {offsets = [0, 0], sizes = [1, 384], strides = [1, 1]} : vector<9x384xf32> to vector<1x384xf32>
    %9 = vector.extract_strided_slice %7 {offsets = [1, 0], sizes = [1, 128], strides = [1, 1]} : vector<9x384xf32> to vector<1x128xf32>
    %10 = vector.extract_strided_slice %7 {offsets = [2, 0], sizes = [1, 128], strides = [1, 1]} : vector<9x384xf32> to vector<1x128xf32>
    %11 = vector.extract_strided_slice %7 {offsets = [3, 0], sizes = [1, 256], strides = [1, 1]} : vector<9x384xf32> to vector<1x256xf32>
    %12 = vector.extract_strided_slice %7 {offsets = [4, 0], sizes = [1, 128], strides = [1, 1]} : vector<9x384xf32> to vector<1x128xf32>
    %13 = vector.extract_strided_slice %7 {offsets = [5, 0], sizes = [1, 128], strides = [1, 1]} : vector<9x384xf32> to vector<1x128xf32>
    %14 = vector.extract_strided_slice %7 {offsets = [6, 0], sizes = [1, 128], strides = [1, 1]} : vector<9x384xf32> to vector<1x128xf32>
    %15 = vector.extract_strided_slice %7 {offsets = [7, 0], sizes = [1, 128], strides = [1, 1]} : vector<9x384xf32> to vector<1x128xf32>
    %16 = vector.extract_strided_slice %7 {offsets = [8, 0], sizes = [1, 128], strides = [1, 1]} : vector<9x384xf32> to vector<1x128xf32>
    %c0_6 = arith.constant 0 : index
    %c0_7 = arith.constant 0 : index
    %c0_8 = arith.constant 0 : index
    %17 = vector.load %arg2[%c0_6, %c0_7, %c0_8] : memref<2x1x8xf32, #tpu.memory_space<vmem>>, vector<2x1x8xf32>
    %cst = arith.constant 5.000000e-01 : f32
    %18 = vector.broadcast %cst : f32 to vector<2x1x8xf32>
    %19 = arith.cmpf ogt, %17, %18 : vector<2x1x8xf32>
    %c0_9 = arith.constant 0 : index
    %c0_10 = arith.constant 0 : index
    %c0_11 = arith.constant 0 : index
    %20 = vector.load %arg4[%c0_9, %c0_10, %c0_11] : memref<1x128x384xbf16, #tpu.memory_space<vmem>>, vector<1x128x384xbf16>
    %21 = vector.shape_cast %20 : vector<1x128x384xbf16> to vector<128x384xbf16>
    %cst_12 = arith.constant dense<0.000000e+00> : vector<16x384xf32>
    %22 = tpu.matmul %5, %21, %cst_12 {dimension_numbers = #tpu.dot_dimension_numbers<[1], [0], [0], [1], [0, 0, 1, 1], [], []>} : vector<16x128xbf16>, vector<128x384xbf16>, vector<16x384xf32> -> vector<16x384xf32>
    %23 = vector.broadcast %8 : vector<1x384xf32> to vector<16x384xf32>
    %24 = arith.addf %22, %23 : vector<16x384xf32>
    %25 = vector.extract_strided_slice %24 {offsets = [0, 0], sizes = [16, 128], strides = [1, 1]} : vector<16x384xf32> to vector<16x128xf32>
    %26 = vector.shape_cast %25 : vector<16x128xf32> to vector<2x8x128xf32>
    %27 = arith.truncf %26 : vector<2x8x128xf32> to vector<2x8x128xbf16>
    %28 = vector.extract_strided_slice %24 {offsets = [0, 128], sizes = [16, 128], strides = [1, 1]} : vector<16x384xf32> to vector<16x128xf32>
    %29 = vector.shape_cast %28 : vector<16x128xf32> to vector<2x8x128xf32>
    %30 = arith.truncf %29 : vector<2x8x128xf32> to vector<2x8x128xbf16>
    %31 = vector.extract_strided_slice %24 {offsets = [0, 256], sizes = [16, 128], strides = [1, 1]} : vector<16x384xf32> to vector<16x128xf32>
    %32 = vector.shape_cast %31 : vector<16x128xf32> to vector<2x8x128xf32>
    %33 = arith.truncf %32 : vector<2x8x128xf32> to vector<2x8x128xbf16>
    %34 = vector.extract_strided_slice %27 {offsets = [0, 0, 0], sizes = [2, 8, 64], strides = [1, 1, 1]} : vector<2x8x128xbf16> to vector<2x8x64xbf16>
    %35 = vector.extract_strided_slice %30 {offsets = [0, 0, 0], sizes = [2, 8, 64], strides = [1, 1, 1]} : vector<2x8x128xbf16> to vector<2x8x64xbf16>
    "tpu.trace_start"() <{level = 10 : i32, message = "bqd,bkd->bqk"}> : () -> ()
    %cst_13 = arith.constant dense<0.000000e+00> : vector<2x8x8xf32>
    %36 = tpu.matmul %34, %35, %cst_13 {dimension_numbers = #tpu.dot_dimension_numbers<[2], [2], [1], [1], [0, 0, 0, 1, 1, 1], [0], [0]>} : vector<2x8x64xbf16>, vector<2x8x64xbf16>, vector<2x8x8xf32> -> vector<2x8x8xf32>
    %cst_14 = arith.constant -1.000000e+30 : f32
    "tpu.trace_stop"() : () -> ()
    %37 = vector.shape_cast %19 : vector<2x1x8xi1> to vector<2x1x8xi1>
    %38 = vector.broadcast %37 : vector<2x1x8xi1> to vector<2x8x8xi1>
    %39 = vector.broadcast %cst_14 : f32 to vector<2x8x8xf32>
    %40 = arith.select %38, %36, %39 : vector<2x8x8xi1>, vector<2x8x8xf32>
    %cst_15 = arith.constant dense<0xFF800000> : vector<2x8xf32>
    %41 = vector.multi_reduction <maximumf>, %40, %cst_15 [2] : vector<2x8x8xf32> to vector<2x8xf32>
    %42 = vector.shape_cast %41 : vector<2x8xf32> to vector<2x8x1xf32>
    %43 = vector.broadcast %42 : vector<2x8x1xf32> to vector<2x8x8xf32>
    %44 = arith.subf %40, %43 : vector<2x8x8xf32>
    %45 = math.exp %44 : vector<2x8x8xf32>
    %cst_16 = arith.constant dense<0.000000e+00> : vector<2x8xf32>
    %46 = vector.multi_reduction <add>, %45, %cst_16 [2] : vector<2x8x8xf32> to vector<2x8xf32>
    %47 = vector.shape_cast %46 : vector<2x8xf32> to vector<2x8x1xf32>
    %48 = tpu.reciprocal %47 {approx = true} : vector<2x8x1xf32> -> vector<2x8x1xf32>
    %49 = vector.broadcast %48 : vector<2x8x1xf32> to vector<2x8x8xf32>
    %50 = arith.mulf %45, %49 : vector<2x8x8xf32>
    %51 = arith.truncf %50 : vector<2x8x8xf32> to vector<2x8x8xbf16>
    %52 = vector.extract_strided_slice %33 {offsets = [0, 0, 0], sizes = [2, 8, 64], strides = [1, 1, 1]} : vector<2x8x128xbf16> to vector<2x8x64xbf16>
    "tpu.trace_start"() <{level = 10 : i32, message = "bqk,bkd->bqd"}> : () -> ()
    %cst_17 = arith.constant dense<0.000000e+00> : vector<2x8x64xf32>
    %53 = tpu.matmul %51, %52, %cst_17 {dimension_numbers = #tpu.dot_dimension_numbers<[2], [1], [1], [2], [0, 0, 0, 1, 1, 2], [0], [0]>} : vector<2x8x8xbf16>, vector<2x8x64xbf16>, vector<2x8x64xf32> -> vector<2x8x64xf32>
    "tpu.trace_stop"() : () -> ()
    %54 = vector.extract_strided_slice %27 {offsets = [0, 0, 64], sizes = [2, 8, 64], strides = [1, 1, 1]} : vector<2x8x128xbf16> to vector<2x8x64xbf16>
    %55 = vector.extract_strided_slice %30 {offsets = [0, 0, 64], sizes = [2, 8, 64], strides = [1, 1, 1]} : vector<2x8x128xbf16> to vector<2x8x64xbf16>
    "tpu.trace_start"() <{level = 10 : i32, message = "bqd,bkd->bqk"}> : () -> ()
    %cst_18 = arith.constant dense<0.000000e+00> : vector<2x8x8xf32>
    %56 = tpu.matmul %54, %55, %cst_18 {dimension_numbers = #tpu.dot_dimension_numbers<[2], [2], [1], [1], [0, 0, 0, 1, 1, 1], [0], [0]>} : vector<2x8x64xbf16>, vector<2x8x64xbf16>, vector<2x8x8xf32> -> vector<2x8x8xf32>
    %cst_19 = arith.constant -1.000000e+30 : f32
    "tpu.trace_stop"() : () -> ()
    %57 = vector.shape_cast %19 : vector<2x1x8xi1> to vector<2x1x8xi1>
    %58 = vector.broadcast %57 : vector<2x1x8xi1> to vector<2x8x8xi1>
    %59 = vector.broadcast %cst_19 : f32 to vector<2x8x8xf32>
    %60 = arith.select %58, %56, %59 : vector<2x8x8xi1>, vector<2x8x8xf32>
    %cst_20 = arith.constant dense<0xFF800000> : vector<2x8xf32>
    %61 = vector.multi_reduction <maximumf>, %60, %cst_20 [2] : vector<2x8x8xf32> to vector<2x8xf32>
    %62 = vector.shape_cast %61 : vector<2x8xf32> to vector<2x8x1xf32>
    %63 = vector.broadcast %62 : vector<2x8x1xf32> to vector<2x8x8xf32>
    %64 = arith.subf %60, %63 : vector<2x8x8xf32>
    %65 = math.exp %64 : vector<2x8x8xf32>
    %cst_21 = arith.constant dense<0.000000e+00> : vector<2x8xf32>
    %66 = vector.multi_reduction <add>, %65, %cst_21 [2] : vector<2x8x8xf32> to vector<2x8xf32>
    %67 = vector.shape_cast %66 : vector<2x8xf32> to vector<2x8x1xf32>
    %68 = tpu.reciprocal %67 {approx = true} : vector<2x8x1xf32> -> vector<2x8x1xf32>
    %69 = vector.broadcast %68 : vector<2x8x1xf32> to vector<2x8x8xf32>
    %70 = arith.mulf %65, %69 : vector<2x8x8xf32>
    %71 = arith.truncf %70 : vector<2x8x8xf32> to vector<2x8x8xbf16>
    %72 = vector.extract_strided_slice %33 {offsets = [0, 0, 64], sizes = [2, 8, 64], strides = [1, 1, 1]} : vector<2x8x128xbf16> to vector<2x8x64xbf16>
    "tpu.trace_start"() <{level = 10 : i32, message = "bqk,bkd->bqd"}> : () -> ()
    %cst_22 = arith.constant dense<0.000000e+00> : vector<2x8x64xf32>
    %73 = tpu.matmul %71, %72, %cst_22 {dimension_numbers = #tpu.dot_dimension_numbers<[2], [1], [1], [2], [0, 0, 0, 1, 1, 2], [0], [0]>} : vector<2x8x8xbf16>, vector<2x8x64xbf16>, vector<2x8x64xf32> -> vector<2x8x64xf32>
    "tpu.trace_stop"() : () -> ()
    %74 = tpu.concatenate %53, %73 in 2 : vector<2x8x64xf32>, vector<2x8x64xf32> -> vector<2x8x128xf32>
    %75 = vector.shape_cast %74 : vector<2x8x128xf32> to vector<16x128xf32>
    %76 = arith.truncf %75 : vector<16x128xf32> to vector<16x128xbf16>
    %c0_23 = arith.constant 0 : index
    %c0_24 = arith.constant 0 : index
    %c0_25 = arith.constant 0 : index
    %77 = vector.load %arg5[%c0_23, %c0_24, %c0_25] : memref<1x128x128xbf16, #tpu.memory_space<vmem>>, vector<1x128x128xbf16>
    %78 = vector.shape_cast %77 : vector<1x128x128xbf16> to vector<128x128xbf16>
    %cst_26 = arith.constant dense<0.000000e+00> : vector<16x128xf32>
    %79 = tpu.matmul %76, %78, %cst_26 {dimension_numbers = #tpu.dot_dimension_numbers<[1], [0], [0], [1], [0, 0, 1, 1], [], []>} : vector<16x128xbf16>, vector<128x128xbf16>, vector<16x128xf32> -> vector<16x128xf32>
    %80 = vector.broadcast %9 : vector<1x128xf32> to vector<16x128xf32>
    %81 = arith.addf %79, %80 : vector<16x128xf32>
    %82 = arith.addf %4, %81 : vector<16x128xf32>
    %cst_27 = arith.constant dense<0.000000e+00> : vector<16xf32>
    %83 = vector.multi_reduction <add>, %82, %cst_27 [1] : vector<16x128xf32> to vector<16xf32>
    %84 = vector.shape_cast %83 : vector<16xf32> to vector<16x1xf32>
    %cst_28 = arith.constant 1.280000e+02 : f32
    %85 = vector.broadcast %cst_28 : f32 to vector<16x1xf32>
    %86 = arith.divf %84, %85 : vector<16x1xf32>
    %87 = vector.broadcast %86 : vector<16x1xf32> to vector<16x128xf32>
    %88 = arith.subf %82, %87 : vector<16x128xf32>
    %89 = arith.mulf %88, %88 : vector<16x128xf32>
    %cst_29 = arith.constant dense<0.000000e+00> : vector<16xf32>
    %90 = vector.multi_reduction <add>, %89, %cst_29 [1] : vector<16x128xf32> to vector<16xf32>
    %91 = vector.shape_cast %90 : vector<16xf32> to vector<16x1xf32>
    %cst_30 = arith.constant 1.280000e+02 : f32
    %92 = vector.broadcast %cst_30 : f32 to vector<16x1xf32>
    %93 = arith.divf %91, %92 : vector<16x1xf32>
    %94 = vector.broadcast %86 : vector<16x1xf32> to vector<16x128xf32>
    %95 = arith.subf %82, %94 : vector<16x128xf32>
    %cst_31 = arith.constant 9.99999974E-6 : f32
    %96 = vector.broadcast %cst_31 : f32 to vector<16x1xf32>
    %97 = arith.addf %93, %96 : vector<16x1xf32>
    %98 = math.rsqrt %97 : vector<16x1xf32>
    %99 = vector.broadcast %98 : vector<16x1xf32> to vector<16x128xf32>
    %100 = arith.mulf %95, %99 : vector<16x128xf32>
    %101 = vector.broadcast %13 : vector<1x128xf32> to vector<16x128xf32>
    %102 = arith.mulf %100, %101 : vector<16x128xf32>
    %103 = vector.broadcast %14 : vector<1x128xf32> to vector<16x128xf32>
    %104 = arith.addf %102, %103 : vector<16x128xf32>
    %105 = vector.broadcast %10 : vector<1x128xf32> to vector<16x128xf32>
    %106 = arith.mulf %104, %105 : vector<16x128xf32>
    %cst_32 = arith.constant dense<0.000000e+00> : vector<16xf32>
    %107 = vector.multi_reduction <add>, %106, %cst_32 [1] : vector<16x128xf32> to vector<16xf32>
    %108 = vector.shape_cast %107 : vector<16xf32> to vector<16x1xf32>
    %109 = arith.negf %108 : vector<16x1xf32>
    %110 = math.exp %109 : vector<16x1xf32>
    %cst_33 = arith.constant 1.000000e+00 : f32
    %111 = vector.broadcast %cst_33 : f32 to vector<16x1xf32>
    %112 = arith.addf %111, %110 : vector<16x1xf32>
    %113 = arith.divf %111, %112 : vector<16x1xf32>
    %114 = arith.truncf %104 : vector<16x128xf32> to vector<16x128xbf16>
    %c0_34 = arith.constant 0 : index
    %c0_35 = arith.constant 0 : index
    %c0_36 = arith.constant 0 : index
    %115 = vector.load %arg6[%c0_34, %c0_35, %c0_36] : memref<1x128x256xbf16, #tpu.memory_space<vmem>>, vector<1x128x256xbf16>
    %116 = vector.shape_cast %115 : vector<1x128x256xbf16> to vector<128x256xbf16>
    %cst_37 = arith.constant dense<0.000000e+00> : vector<16x256xf32>
    %117 = tpu.matmul %114, %116, %cst_37 {dimension_numbers = #tpu.dot_dimension_numbers<[1], [0], [0], [1], [0, 0, 1, 1], [], []>} : vector<16x128xbf16>, vector<128x256xbf16>, vector<16x256xf32> -> vector<16x256xf32>
    %118 = vector.broadcast %11 : vector<1x256xf32> to vector<16x256xf32>
    %119 = arith.addf %117, %118 : vector<16x256xf32>
    %120 = vector.broadcast %113 : vector<16x1xf32> to vector<16x256xf32>
    %121 = arith.mulf %119, %120 : vector<16x256xf32>
    %cst_38 = arith.constant 0.000000e+00 : f32
    %122 = vector.broadcast %cst_38 : f32 to vector<16x256xf32>
    %123 = arith.maximumf %121, %122 : vector<16x256xf32>
    %124 = arith.truncf %123 : vector<16x256xf32> to vector<16x256xbf16>
    %c0_39 = arith.constant 0 : index
    %c0_40 = arith.constant 0 : index
    %c0_41 = arith.constant 0 : index
    %125 = vector.load %arg7[%c0_39, %c0_40, %c0_41] : memref<1x256x128xbf16, #tpu.memory_space<vmem>>, vector<1x256x128xbf16>
    %126 = vector.shape_cast %125 : vector<1x256x128xbf16> to vector<256x128xbf16>
    %cst_42 = arith.constant dense<0.000000e+00> : vector<16x128xf32>
    %127 = tpu.matmul %124, %126, %cst_42 {dimension_numbers = #tpu.dot_dimension_numbers<[1], [0], [0], [1], [0, 0, 1, 1], [], []>} : vector<16x256xbf16>, vector<256x128xbf16>, vector<16x128xf32> -> vector<16x128xf32>
    %128 = vector.broadcast %12 : vector<1x128xf32> to vector<16x128xf32>
    %129 = arith.addf %127, %128 : vector<16x128xf32>
    %130 = arith.addf %104, %129 : vector<16x128xf32>
    %cst_43 = arith.constant dense<0.000000e+00> : vector<16xf32>
    %131 = vector.multi_reduction <add>, %130, %cst_43 [1] : vector<16x128xf32> to vector<16xf32>
    %132 = vector.shape_cast %131 : vector<16xf32> to vector<16x1xf32>
    %cst_44 = arith.constant 1.280000e+02 : f32
    %133 = vector.broadcast %cst_44 : f32 to vector<16x1xf32>
    %134 = arith.divf %132, %133 : vector<16x1xf32>
    %135 = vector.broadcast %134 : vector<16x1xf32> to vector<16x128xf32>
    %136 = arith.subf %130, %135 : vector<16x128xf32>
    %137 = arith.mulf %136, %136 : vector<16x128xf32>
    %cst_45 = arith.constant dense<0.000000e+00> : vector<16xf32>
    %138 = vector.multi_reduction <add>, %137, %cst_45 [1] : vector<16x128xf32> to vector<16xf32>
    %139 = vector.shape_cast %138 : vector<16xf32> to vector<16x1xf32>
    %cst_46 = arith.constant 1.280000e+02 : f32
    %140 = vector.broadcast %cst_46 : f32 to vector<16x1xf32>
    %141 = arith.divf %139, %140 : vector<16x1xf32>
    %142 = vector.broadcast %134 : vector<16x1xf32> to vector<16x128xf32>
    %143 = arith.subf %130, %142 : vector<16x128xf32>
    %cst_47 = arith.constant 9.99999974E-6 : f32
    %144 = vector.broadcast %cst_47 : f32 to vector<16x1xf32>
    %145 = arith.addf %141, %144 : vector<16x1xf32>
    %146 = math.rsqrt %145 : vector<16x1xf32>
    %147 = vector.broadcast %146 : vector<16x1xf32> to vector<16x128xf32>
    %148 = arith.mulf %143, %147 : vector<16x128xf32>
    %149 = vector.broadcast %15 : vector<1x128xf32> to vector<16x128xf32>
    %150 = arith.mulf %148, %149 : vector<16x128xf32>
    %151 = vector.broadcast %16 : vector<1x128xf32> to vector<16x128xf32>
    %152 = arith.addf %150, %151 : vector<16x128xf32>
    %153 = vector.shape_cast %152 : vector<16x128xf32> to vector<2x8x128xf32>
    %c0_48 = arith.constant 0 : index
    %c0_49 = arith.constant 0 : index
    %c0_50 = arith.constant 0 : index
    %154 = vector.load %arg10[%c0_48, %c0_49, %c0_50] : memref<2x8x128xf32, #tpu.memory_space<vmem>>, vector<2x8x128xf32>
    tpu.vector_store %arg10[%c0_48, %c0_49, %c0_50], %153 {strides = array<i32>} : memref<2x8x128xf32, #tpu.memory_space<vmem>>, vector<2x8x128xf32>,
    %c1_i32 = arith.constant 1 : i32
    %155 = arith.cmpi eq, %arg1, %c1_i32 : i32
    %156 = arith.extui %155 : i1 to i32
    %c0_i32_51 = arith.constant 0 : i32
    %157 = arith.cmpi ne, %156, %c0_i32_51 : i32
    scf.if %157 {
      %c0_52 = arith.constant 0 : index
      %c0_53 = arith.constant 0 : index
      %c0_54 = arith.constant 0 : index
      %158 = vector.load %arg9[%c0_52, %c0_53, %c0_54] : memref<2x8x128xf32, #tpu.memory_space<vmem>>, vector<2x8x128xf32>
      tpu.vector_store %arg9[%c0_52, %c0_53, %c0_54], %153 {strides = array<i32>} : memref<2x8x128xf32, #tpu.memory_space<vmem>>, vector<2x8x128xf32>,
    } else {
    }
    return
  }
  func.func @transform_0(%arg0: i32, %arg1: i32) -> (i32, i32, i32) {
    %c0_i32 = arith.constant 0 : i32
    %c0_i32_0 = arith.constant 0 : i32
    %c0_i32_1 = arith.constant 0 : i32
    return %arg0, %c0_i32, %c0_i32_0 : i32, i32, i32
  }
  func.func @transform_1(%arg0: i32, %arg1: i32) -> (i32, i32, i32) {
    %c0_i32 = arith.constant 0 : i32
    %c0_i32_0 = arith.constant 0 : i32
    %c0_i32_1 = arith.constant 0 : i32
    return %arg0, %c0_i32, %c0_i32_0 : i32, i32, i32
  }
  func.func @transform_2(%arg0: i32, %arg1: i32) -> (i32, i32, i32) {
    %c0_i32 = arith.constant 0 : i32
    %c0_i32_0 = arith.constant 0 : i32
    %c0_i32_1 = arith.constant 0 : i32
    return %arg1, %c0_i32, %c0_i32_0 : i32, i32, i32
  }
  func.func @transform_3(%arg0: i32, %arg1: i32) -> (i32, i32, i32) {
    %c0_i32 = arith.constant 0 : i32
    %c0_i32_0 = arith.constant 0 : i32
    %c0_i32_1 = arith.constant 0 : i32
    return %arg1, %c0_i32, %c0_i32_0 : i32, i32, i32
  }
  func.func @transform_4(%arg0: i32, %arg1: i32) -> (i32, i32, i32) {
    %c0_i32 = arith.constant 0 : i32
    %c0_i32_0 = arith.constant 0 : i32
    %c0_i32_1 = arith.constant 0 : i32
    return %arg1, %c0_i32, %c0_i32_0 : i32, i32, i32
  }
  func.func @transform_5(%arg0: i32, %arg1: i32) -> (i32, i32, i32) {
    %c0_i32 = arith.constant 0 : i32
    %c0_i32_0 = arith.constant 0 : i32
    %c0_i32_1 = arith.constant 0 : i32
    return %arg1, %c0_i32, %c0_i32_0 : i32, i32, i32
  }
  func.func @transform_6(%arg0: i32, %arg1: i32) -> (i32, i32, i32) {
    %c0_i32 = arith.constant 0 : i32
    %c0_i32_0 = arith.constant 0 : i32
    %c0_i32_1 = arith.constant 0 : i32
    return %arg1, %c0_i32, %c0_i32_0 : i32, i32, i32
  }
  func.func @transform_7(%arg0: i32, %arg1: i32) -> (i32, i32, i32) {
    %c0_i32 = arith.constant 0 : i32
    %c0_i32_0 = arith.constant 0 : i32
    %c0_i32_1 = arith.constant 0 : i32
    return %arg0, %c0_i32, %c0_i32_0 : i32, i32, i32
  }
}

</mosaic_0001>

<llo_original>
// kernel: tpu_custom_call.1
$region0: #{tpu_custom_call.1}
  #allocation0 [shape = 'u32[]', space=smem, size = 0x4, offset = 0x4, fixed_abs, tag = 'smem constant byte address 0x4 - core index']
  #allocation1 [shape = 'u32[144,128]{1,0:T(1,128)}', space=vmem, size = 0x12000, scoped, tag = 'internal scratch']
  #allocation2 [shape = 'f32[2,8,128]{2,1,0:T(8,128)}', space=vmem, size = 0x2000, scoped, tag = 'scratch operand']
  %s0 = inlined_call_operand.vmem [shape: f32[2,1,8], index: 0, kind: input, shape index: {}]
  %s1 = inlined_call_operand.vmem [shape: f32[2,8,128], index: 1, kind: input, shape index: {}]
  %s2 = inlined_call_operand.hbm [shape: bf16[2,128,384], index: 2, kind: input, shape index: {}]
  %s3 = inlined_call_operand.vmem [shape: bf16[2,128,128], index: 3, kind: input, shape index: {}]
  %s4 = inlined_call_operand.hbm [shape: bf16[2,128,256], index: 4, kind: input, shape index: {}]
  %s5 = inlined_call_operand.hbm [shape: bf16[2,256,128], index: 5, kind: input, shape index: {}]
  %s6 = inlined_call_operand.vmem [shape: f32[2,9,384], index: 6, kind: input, shape index: {}]
  %s7 = inlined_call_operand.hbm [shape: f32[2,8,128], index: 7, kind: output, shape index: {}]
  %s8 = sld [smem:[#allocation0]]
  $region81: #{tpu_custom_call.1} parent=0
    _
  %s10 = ssub.s32 1, %s8
  %s11 = scalar_select 0, %s10, %s8
  $region1: #{tpu_custom_call.1} parent=0
    #allocation3 [shape = 'u8[196608]{0}', space=vmem, size = 0x30000, scoped, tag = 'input window, operand 2']
    #allocation4 [shape = 's32[2]{0}', space=sflag, size = 0x8, scoped, tag = 'scoped memory for tpu_custom_call.1']
    #allocation5 [shape = 's32[2]{0}', space=sflag, size = 0x8, scoped, tag = 'scoped memory for tpu_custom_call.1']
    #allocation6 [shape = 'u8[131072]{0}', space=vmem, size = 0x20000, scoped, tag = 'input window, operand 4']
    #allocation7 [shape = 's32[2]{0}', space=sflag, size = 0x8, scoped, tag = 'scoped memory for tpu_custom_call.1']
    #allocation8 [shape = 'u8[131072]{0}', space=vmem, size = 0x20000, scoped, tag = 'input window, operand 5']
    #allocation9 [shape = 'u8[8192]{0}', space=vmem, size = 0x2000, scoped, tag = 'output window, operand 0, single buffered']
    %12 = vsyncpa [#allocation4], 0
    %s13 = scalar_lea.sflag [#allocation4], 1
    %14 = vsyncpa %s13, 0
    %15 = vsyncpa [#allocation7], 0
    %s16 = scalar_lea.sflag [#allocation7], 1
    %17 = vsyncpa %s16, 0
    %18 = vsyncpa [#allocation5], 0
    loop: start=0, step=1, limit=4
    $region2: #{tpu_custom_call.1} parent=1 // loop_pre_header
      _
    $region3: #{tpu_custom_call.1} parent=1 // loop_header
      %s20 = sphi 0, %s24
      %p21 = scmp.ge.s32.totalorder %s20, 4
      %s27 = sphi 0, %s39
      %s28 = sphi 0, %s35
      %s29 = sphi 0, %s27
      %s30 = sphi 0, %s28
      %s31 = sphi 0, %s29
      %s32 = sphi 0, %s30
      %s42 = sphi 0, %s44
      %s45 = sphi 0, %s42
      %s46 = sphi 0, %s45
      %s62 = sphi 0, %s46
      %s68 = sphi 0, %s70
      %s71 = sphi 0, %s68
      %s72 = sphi 0, %s71
      %s88 = sphi 0, %s72
      %s94 = sphi 0, %s96
      %s97 = sphi 0, %s94
      %s98 = sphi 0, %s97
      %s114 = sphi 0, %s98
      %s120 = sphi 0, %s122
      %s123 = sphi 0, %s120
      %s124 = sphi 0, %s123
      %s140 = sphi 0, %s124
      %s146 = sphi 0, %s148
      %s149 = sphi 0, %s146
      %s150 = sphi 0, %s149
      %s166 = sphi 0, %s150
      %s172 = sphi 0, %s174
      %s175 = sphi 0, %s172
      %s176 = sphi 0, %s175
      %s192 = sphi 0, %s176
      %s198 = sphi 0, %s200
      %s201 = sphi 0, %s198
      %s202 = sphi 0, %s201
      %s218 = sphi 0, %s202
      %s224 = sphi 0, %s226
      %s227 = sphi 0, %s224
      %s228 = sphi 0, %s227
      %s244 = sphi 0, %s228
    $region4: #{tpu_custom_call.1} parent=1 // loop_header_branch
      %23 = sbr.rel (%p21) target = $region8
    $region5: #{tpu_custom_call.1} parent=1 // loop_body
      %s25 = ssub.s32 %s20, 1
      %s26 = ssub.s32 %s20, 2
      %s33 = sadd.s32 1, %s28
      %p34 = scmp.ge.s32.totalorder %s33, 2
      %s35 = scalar_select %p34, 0, %s33
      %s36 = sadd.s32 1, %s27
      %s37 = scalar_select %p34, %s36, %s27
      %p38 = scmp.ge.s32.totalorder %s37, 1
      %s39 = scalar_select %p38, 0, %s37
      %s40 = ssub.s32 %s27, %s39
      %p41 = scmp.eq.s32.totalorder %s40, 0
      %s43 = sadd.s32 %s42, 1
      %s44 = scalar_select %p41, %s42, %s43
      %p47 = pneg %p41
      %p48 = scmp.eq.s32.totalorder %s20, 1
      %p49 = por %p47, %p48
      %p50 = scmp.ne.s32.totalorder %s42, %s45
      %p51 = scmp.eq.s32.totalorder %s20, 0
      %p52 = por %p50, %p51
      %p53 = scmp.ne.s32.totalorder %s42, %s45
      %p54 = scmp.eq.s32.totalorder %s25, 1
      %p55 = por %p53, %p54
      %p56 = scmp.ne.s32.totalorder %s45, %s46
      %p57 = scmp.eq.s32.totalorder %s25, 0
      %p58 = por %p56, %p57
      %p59 = scmp.ne.s32.totalorder %s45, %s46
      %p60 = scmp.eq.s32.totalorder %s26, 1
      %p61 = por %p59, %p60
      %p63 = scmp.ne.s32.totalorder %s46, %s62
      %p64 = scmp.eq.s32.totalorder %s26, 0
      %p65 = por %p63, %p64
      %s66 = ssub.s32 %s27, %s39
      %p67 = scmp.eq.s32.totalorder %s66, 0
      %s69 = sadd.s32 %s68, 1
      %s70 = scalar_select %p67, %s68, %s69
      %p73 = pneg %p67
      %p74 = scmp.eq.s32.totalorder %s20, 1
      %p75 = por %p73, %p74
      %p76 = scmp.ne.s32.totalorder %s68, %s71
      %p77 = scmp.eq.s32.totalorder %s20, 0
      %p78 = por %p76, %p77
      %p79 = scmp.ne.s32.totalorder %s68, %s71
      %p80 = scmp.eq.s32.totalorder %s25, 1
      %p81 = por %p79, %p80
      %p82 = scmp.ne.s32.totalorder %s71, %s72
      %p83 = scmp.eq.s32.totalorder %s25, 0
      %p84 = por %p82, %p83
      %p85 = scmp.ne.s32.totalorder %s71, %s72
      %p86 = scmp.eq.s32.totalorder %s26, 1
      %p87 = por %p85, %p86
      %p89 = scmp.ne.s32.totalorder %s72, %s88
      %p90 = scmp.eq.s32.totalorder %s26, 0
      %p91 = por %p89, %p90
      %s92 = ssub.s32 %s28, %s35
      %p93 = scmp.eq.s32.totalorder %s92, 0
      %s95 = sadd.s32 %s94, 1
      %s96 = scalar_select %p93, %s94, %s95
      %p99 = pneg %p93
      %p100 = scmp.eq.s32.totalorder %s20, 1
      %p101 = por %p99, %p100
      %p102 = scmp.ne.s32.totalorder %s94, %s97
      %p103 = scmp.eq.s32.totalorder %s20, 0
      %p104 = por %p102, %p103
      %p105 = scmp.ne.s32.totalorder %s94, %s97
      %p106 = scmp.eq.s32.totalorder %s25, 1
      %p107 = por %p105, %p106
      %p108 = scmp.ne.s32.totalorder %s97, %s98
      %p109 = scmp.eq.s32.totalorder %s25, 0
      %p110 = por %p108, %p109
      %p111 = scmp.ne.s32.totalorder %s97, %s98
      %p112 = scmp.eq.s32.totalorder %s26, 1
      %p113 = por %p111, %p112
      %p115 = scmp.ne.s32.totalorder %s98, %s114
      %p116 = scmp.eq.s32.totalorder %s26, 0
      %p117 = por %p115, %p116
      %s118 = ssub.s32 %s28, %s35
      %p119 = scmp.eq.s32.totalorder %s118, 0
      %s121 = sadd.s32 %s120, 1
      %s122 = scalar_select %p119, %s120, %s121
      %p125 = pneg %p119
      %p126 = scmp.eq.s32.totalorder %s20, 1
      %p127 = por %p125, %p126
      %p128 = scmp.ne.s32.totalorder %s120, %s123
      %p129 = scmp.eq.s32.totalorder %s20, 0
      %p130 = por %p128, %p129
      %p131 = scmp.ne.s32.totalorder %s120, %s123
      %p132 = scmp.eq.s32.totalorder %s25, 1
      %p133 = por %p131, %p132
      %p134 = scmp.ne.s32.totalorder %s123, %s124
      %p135 = scmp.eq.s32.totalorder %s25, 0
      %p136 = por %p134, %p135
      %p137 = scmp.ne.s32.totalorder %s123, %s124
      %p138 = scmp.eq.s32.totalorder %s26, 1
      %p139 = por %p137, %p138
      %p141 = scmp.ne.s32.totalorder %s124, %s140
      %p142 = scmp.eq.s32.totalorder %s26, 0
      %p143 = por %p141, %p142
      %s144 = ssub.s32 %s28, %s35
      %p145 = scmp.eq.s32.totalorder %s144, 0
      %s147 = sadd.s32 %s146, 1
      %s148 = scalar_select %p145, %s146, %s147
      %p151 = pneg %p145
      %p152 = scmp.eq.s32.totalorder %s20, 1
      %p153 = por %p151, %p152
      %p154 = scmp.ne.s32.totalorder %s146, %s149
      %p155 = scmp.eq.s32.totalorder %s20, 0
      %p156 = por %p154, %p155
      %p157 = scmp.ne.s32.totalorder %s146, %s149
      %p158 = scmp.eq.s32.totalorder %s25, 1
      %p159 = por %p157, %p158
      %p160 = scmp.ne.s32.totalorder %s149, %s150
      %p161 = scmp.eq.s32.totalorder %s25, 0
      %p162 = por %p160, %p161
      %p163 = scmp.ne.s32.totalorder %s149, %s150
      %p164 = scmp.eq.s32.totalorder %s26, 1
      %p165 = por %p163, %p164
      %p167 = scmp.ne.s32.totalorder %s150, %s166
      %p168 = scmp.eq.s32.totalorder %s26, 0
      %p169 = por %p167, %p168
      %s170 = ssub.s32 %s28, %s35
      %p171 = scmp.eq.s32.totalorder %s170, 0
      %s173 = sadd.s32 %s172, 1
      %s174 = scalar_select %p171, %s172, %s173
      %p177 = pneg %p171
      %p178 = scmp.eq.s32.totalorder %s20, 1
      %p179 = por %p177, %p178
      %p180 = scmp.ne.s32.totalorder %s172, %s175
      %p181 = scmp.eq.s32.totalorder %s20, 0
      %p182 = por %p180, %p181
      %p183 = scmp.ne.s32.totalorder %s172, %s175
      %p184 = scmp.eq.s32.totalorder %s25, 1
      %p185 = por %p183, %p184
      %p186 = scmp.ne.s32.totalorder %s175, %s176
      %p187 = scmp.eq.s32.totalorder %s25, 0
      %p188 = por %p186, %p187
      %p189 = scmp.ne.s32.totalorder %s175, %s176
      %p190 = scmp.eq.s32.totalorder %s26, 1
      %p191 = por %p189, %p190
      %p193 = scmp.ne.s32.totalorder %s176, %s192
      %p194 = scmp.eq.s32.totalorder %s26, 0
      %p195 = por %p193, %p194
      %s196 = ssub.s32 %s28, %s35
      %p197 = scmp.eq.s32.totalorder %s196, 0
      %s199 = sadd.s32 %s198, 1
      %s200 = scalar_select %p197, %s198, %s199
      %p203 = pneg %p197
      %p204 = scmp.eq.s32.totalorder %s20, 1
      %p205 = por %p203, %p204
      %p206 = scmp.ne.s32.totalorder %s198, %s201
      %p207 = scmp.eq.s32.totalorder %s20, 0
      %p208 = por %p206, %p207
      %p209 = scmp.ne.s32.totalorder %s198, %s201
      %p210 = scmp.eq.s32.totalorder %s25, 1
      %p211 = por %p209, %p210
      %p212 = scmp.ne.s32.totalorder %s201, %s202
      %p213 = scmp.eq.s32.totalorder %s25, 0
      %p214 = por %p212, %p213
      %p215 = scmp.ne.s32.totalorder %s201, %s202
      %p216 = scmp.eq.s32.totalorder %s26, 1
      %p217 = por %p215, %p216
      %p219 = scmp.ne.s32.totalorder %s202, %s218
      %p220 = scmp.eq.s32.totalorder %s26, 0
      %p221 = por %p219, %p220
      %s222 = ssub.s32 %s27, %s39
      %p223 = scmp.eq.s32.totalorder %s222, 0
      %s225 = sadd.s32 %s224, 1
      %s226 = scalar_select %p223, %s224, %s225
      %p229 = pneg %p223
      %p230 = scmp.eq.s32.totalorder %s20, 1
      %p231 = por %p229, %p230
      %p232 = scmp.ne.s32.totalorder %s224, %s227
      %p233 = scmp.eq.s32.totalorder %s20, 0
      %p234 = por %p232, %p233
      %p235 = scmp.ne.s32.totalorder %s224, %s227
      %p236 = scmp.eq.s32.totalorder %s25, 1
      %p237 = por %p235, %p236
      %p238 = scmp.ne.s32.totalorder %s227, %s228
      %p239 = scmp.eq.s32.totalorder %s25, 0
      %p240 = por %p238, %p239
      %p241 = scmp.ne.s32.totalorder %s227, %s228
      %p242 = scmp.eq.s32.totalorder %s26, 1
      %p243 = por %p241, %p242
      %p245 = scmp.ne.s32.totalorder %s228, %s244
      %p246 = scmp.eq.s32.totalorder %s26, 0
      %p247 = por %p245, %p246
      %p248 = scmp.le.s32.totalorder 1, %s20
      %p249 = scmp.lt.s32.totalorder %s20, 3
      %p250 = pnand %p248, %p249
      %p251 = pneg %p250
      // Predicated region
      $region9: #{tpu_custom_call.1} parent=5 // pred_check
        _
      $region10: #{tpu_custom_call.1} parent=5 // pred_check_branch
        %253 = sbr.rel (%p250) target = $region12
      $region11: #{tpu_custom_call.1} parent=5 // pred_region
        %s254 = ssub.s32 %s20, 1
        // Predicated region
        $region13: #{tpu_custom_call.1} parent=11 // pred_check
          %p255 = pneg %p58
        $region14: #{tpu_custom_call.1} parent=11 // pred_check_branch
          %257 = sbr.rel (%p255) target = $region16
        $region15: #{tpu_custom_call.1} parent=11 // pred_region
          %s258 = smul.u32 2, %s29
          %p259 = scmp.lt.s32.totalorder %s258, 1
          %s260 = scalar_select %p259, %s258, 1
          %s261 = scalar_lea.vmem %s0, %s260
          %s262 = smul.u32 2, %s29
        $region16: #{tpu_custom_call.1} parent=11 // pred_fallthru
          _
        // Predicated region
        $region17: #{tpu_custom_call.1} parent=11 // pred_check
          %p263 = pneg %p84
        $region18: #{tpu_custom_call.1} parent=11 // pred_check_branch
          %265 = sbr.rel (%p263) target = $region20
        $region19: #{tpu_custom_call.1} parent=11 // pred_region
          %s266 = smul.u32 2, %s29
          %p267 = scmp.lt.s32.totalorder %s266, 1
          %s268 = scalar_select %p267, %s266, 1
          %s269 = smul.addr %s268, 8
          %s270 = scalar_lea.vmem %s1, %s269
          %s271 = smul.u32 2, %s29
        $region20: #{tpu_custom_call.1} parent=11 // pred_fallthru
          _
      $region12: #{tpu_custom_call.1} parent=5 // pred_fallthru
        _
      %p272 = scmp.lt.s32.totalorder %s20, 2
      // Predicated region
      $region21: #{tpu_custom_call.1} parent=5 // pred_check
        %p273 = pneg %p272
      $region22: #{tpu_custom_call.1} parent=5 // pred_check_branch
        %275 = sbr.rel (%p273) target = $region24
      $region23: #{tpu_custom_call.1} parent=5 // pred_region
        // Predicated region
        $region25: #{tpu_custom_call.1} parent=23 // pred_check
          %p276 = pneg %p104
        $region26: #{tpu_custom_call.1} parent=23 // pred_check_branch
          %278 = sbr.rel (%p276) target = $region28
        $region27: #{tpu_custom_call.1} parent=23 // pred_region
          %s279 = sand.u32 %s94, 1
          %s280 = scalar_lea.sflag [#allocation4], %s279
          %s281 = sand.u32 %s94, 1
          %s282 = smul.addr %s281, 192
          %s283 = scalar_lea.vmem [#allocation3], %s282
          %s285 = ssub.s32 3072, 3072
          %286 = vsyncadd %s280, %s285
          %s287 = smul.addr %s28, 48
          %s288 = smul.addr %s287, 64
          %s289 = scalar_lea.hbm %s2, %s288
          %s290 = sshll.u32 %s283, 4
          %s291 = int_to_ptr.vmem [resolvable:$true] %s290
          %296 = dma.hbm_to_vmem [thread:$0]  %s289, 3072, %s291, %s280, 192, 192, 12
        $region28: #{tpu_custom_call.1} parent=23 // pred_fallthru
          _
        // Predicated region
        $region29: #{tpu_custom_call.1} parent=23 // pred_check
          %p297 = pneg %p130
        $region30: #{tpu_custom_call.1} parent=23 // pred_check_branch
          %299 = sbr.rel (%p297) target = $region32
        $region31: #{tpu_custom_call.1} parent=23 // pred_region
          %p300 = scmp.lt.s32.totalorder %s28, 1
          %s301 = scalar_select %p300, %s28, 1
          %s302 = smul.addr %s301, 16
          %s303 = smul.addr %s302, 4
          %s304 = scalar_lea.vmem %s3, %s303
        $region32: #{tpu_custom_call.1} parent=23 // pred_fallthru
          _
        // Predicated region
        $region33: #{tpu_custom_call.1} parent=23 // pred_check
          %p305 = pneg %p156
        $region34: #{tpu_custom_call.1} parent=23 // pred_check_branch
          %307 = sbr.rel (%p305) target = $region36
        $region35: #{tpu_custom_call.1} parent=23 // pred_region
          %s308 = sand.u32 %s20, 1
          %s309 = scalar_lea.sflag [#allocation7], %s308
          %s310 = sand.u32 %s146, 1
          %s311 = smul.addr %s310, 128
          %s312 = scalar_lea.vmem [#allocation6], %s311
          %s314 = ssub.s32 2048, 2048
          %315 = vsyncadd %s309, %s314
          %s316 = smul.addr %s28, 32
          %s317 = smul.addr %s316, 64
          %s318 = scalar_lea.hbm %s4, %s317
          %s319 = sshll.u32 %s312, 4
          %s320 = int_to_ptr.vmem [resolvable:$true] %s319
          %325 = dma.hbm_to_vmem [thread:$0]  %s318, 2048, %s320, %s309, 128, 128, 8
        $region36: #{tpu_custom_call.1} parent=23 // pred_fallthru
          _
        // Predicated region
        $region37: #{tpu_custom_call.1} parent=23 // pred_check
          %p326 = pneg %p182
        $region38: #{tpu_custom_call.1} parent=23 // pred_check_branch
          %328 = sbr.rel (%p326) target = $region40
        $region39: #{tpu_custom_call.1} parent=23 // pred_region
          %s329 = sand.u32 %s20, 1
          %s330 = scalar_lea.sflag [#allocation7], %s329
          %s331 = sand.u32 %s172, 1
          %s332 = smul.addr %s331, 128
          %s333 = scalar_lea.vmem [#allocation8], %s332
          %s335 = ssub.s32 2048, 2048
          %336 = vsyncadd %s330, %s335
          %s337 = smul.addr %s28, 32
          %s338 = smul.addr %s337, 64
          %s339 = scalar_lea.hbm %s5, %s338
          %s340 = sshll.u32 %s333, 4
          %s341 = int_to_ptr.vmem [resolvable:$true] %s340
          %346 = dma.hbm_to_vmem [thread:$0]  %s339, 2048, %s341, %s330, 64, 64, 4
        $region40: #{tpu_custom_call.1} parent=23 // pred_fallthru
          _
        // Predicated region
        $region41: #{tpu_custom_call.1} parent=23 // pred_check
          %p347 = pneg %p208
        $region42: #{tpu_custom_call.1} parent=23 // pred_check_branch
          %349 = sbr.rel (%p347) target = $region44
        $region43: #{tpu_custom_call.1} parent=23 // pred_region
          %p350 = scmp.lt.s32.totalorder %s28, 1
          %s351 = scalar_select %p350, %s28, 1
          %s352 = smul.addr %s351, 6
          %s353 = smul.addr %s352, 8
          %s354 = scalar_lea.vmem %s6, %s353
        $region44: #{tpu_custom_call.1} parent=23 // pred_fallthru
          _
      $region24: #{tpu_custom_call.1} parent=5 // pred_fallthru
        _
      %p355 = scmp.le.s32.totalorder 1, %s20
      %p356 = scmp.lt.s32.totalorder %s20, 3
      %p357 = pnand %p355, %p356
      %p358 = pneg %p357
      // Predicated region
      $region45: #{tpu_custom_call.1} parent=5 // pred_check
        _
      $region46: #{tpu_custom_call.1} parent=5 // pred_check_branch
        %360 = sbr.rel (%p357) target = $region48
      $region47: #{tpu_custom_call.1} parent=5 // pred_region
        %s361 = ssub.s32 %s20, 1
        %s362 = sand.u32 %s97, 1
        %s363 = scalar_lea.sflag [#allocation4], %s362
        %s364 = sand.u32 %s97, 1
        %s365 = smul.addr %s364, 192
        %s366 = scalar_lea.vmem [#allocation3], %s365
        // Predicated region
        $region49: #{tpu_custom_call.1} parent=47 // pred_check
          %p367 = pneg %p110
        $region50: #{tpu_custom_call.1} parent=47 // pred_check_branch
          %369 = sbr.rel (%p367) target = $region52
        $region51: #{tpu_custom_call.1} parent=47 // pred_region
          %370 = dma.done %s363, 3072
        $region52: #{tpu_custom_call.1} parent=47 // pred_fallthru
          _
        %s371 = sand.u32 %s25, 1
        %s372 = scalar_lea.sflag [#allocation7], %s371
        %s373 = sand.u32 %s149, 1
        %s374 = smul.addr %s373, 128
        %s375 = scalar_lea.vmem [#allocation6], %s374
        // Predicated region
        $region53: #{tpu_custom_call.1} parent=47 // pred_check
          %p376 = pneg %p162
        $region54: #{tpu_custom_call.1} parent=47 // pred_check_branch
          %378 = sbr.rel (%p376) target = $region56
        $region55: #{tpu_custom_call.1} parent=47 // pred_region
          %379 = dma.done %s372, 2048
        $region56: #{tpu_custom_call.1} parent=47 // pred_fallthru
          _
        %s380 = sand.u32 %s25, 1
        %s381 = scalar_lea.sflag [#allocation7], %s380
        %s382 = sand.u32 %s175, 1
        %s383 = smul.addr %s382, 128
        %s384 = scalar_lea.vmem [#allocation8], %s383
        // Predicated region
        $region57: #{tpu_custom_call.1} parent=47 // pred_check
          %p385 = pneg %p188
        $region58: #{tpu_custom_call.1} parent=47 // pred_check_branch
          %387 = sbr.rel (%p385) target = $region60
        $region59: #{tpu_custom_call.1} parent=47 // pred_region
          %388 = dma.done %s381, 2048
        $region60: #{tpu_custom_call.1} parent=47 // pred_fallthru
          _
        %s389 = smul.u32 2, %s29
        %p390 = scmp.lt.s32.totalorder %s389, 1
        %s391 = scalar_select %p390, %s389, 1
        %s392 = scalar_lea.vmem %s0, %s391
        %p393 = pneg %p58
        %p394 = pneg %p55
        %s395 = smul.u32 2, %s29
        %p396 = scmp.lt.s32.totalorder %s395, 1
        %s397 = scalar_select %p396, %s395, 1
        %s398 = smul.addr %s397, 8
        %s399 = scalar_lea.vmem %s1, %s398
        %p400 = pneg %p84
        %p401 = pneg %p81
        %s402 = sand.u32 %s97, 1
        %s403 = scalar_lea.sflag [#allocation4], %s402
        %s404 = sand.u32 %s97, 1
        %s405 = smul.addr %s404, 192
        %s406 = scalar_lea.vmem [#allocation3], %s405
        %p407 = pneg %p110
        %p408 = pneg %p107
        %p409 = scmp.lt.s32.totalorder %s30, 1
        %s410 = scalar_select %p409, %s30, 1
        %s411 = smul.addr %s410, 16
        %s412 = smul.addr %s411, 4
        %s413 = scalar_lea.vmem %s3, %s412
        %p414 = pneg %p136
        %p415 = pneg %p133
        %s416 = sand.u32 %s25, 1
        %s417 = scalar_lea.sflag [#allocation7], %s416
        %s418 = sand.u32 %s149, 1
        %s419 = smul.addr %s418, 128
        %s420 = scalar_lea.vmem [#allocation6], %s419
        %p421 = pneg %p162
        %p422 = pneg %p159
        %s423 = sand.u32 %s25, 1
        %s424 = scalar_lea.sflag [#allocation7], %s423
        %s425 = sand.u32 %s175, 1
        %s426 = smul.addr %s425, 128
        %s427 = scalar_lea.vmem [#allocation8], %s426
        %p428 = pneg %p188
        %p429 = pneg %p185
        %p430 = scmp.lt.s32.totalorder %s30, 1
        %s431 = scalar_select %p430, %s30, 1
        %s432 = smul.addr %s431, 6
        %s433 = smul.addr %s432, 8
        %s434 = scalar_lea.vmem %s6, %s433
        %p435 = pneg %p214
        %p436 = pneg %p211
        %p437 = pneg %p240
        %p438 = pneg %p237
        %s439 = smul.u32 2, %s29
        %p440 = scmp.lt.s32.totalorder %s439, 1
        %s441 = scalar_select %p440, %s439, 1
        %s442 = scalar_lea.vmem %s0, %s441
        %s443 = smul.u32 2, %s29
        %s444 = smul.u32 2, %s29
        %p445 = scmp.lt.s32.totalorder %s444, 1
        %s446 = scalar_select %p445, %s444, 1
        %s447 = smul.addr %s446, 8
        %s448 = scalar_lea.vmem %s1, %s447
        %s449 = smul.u32 2, %s29
        %p450 = scmp.lt.s32.totalorder %s30, 1
        %s451 = scalar_select %p450, %s30, 1
        %s452 = smul.addr %s451, 16
        %s453 = smul.addr %s452, 4
        %s454 = scalar_lea.vmem %s3, %s453
        %p455 = scmp.lt.s32.totalorder %s30, 1
        %s456 = scalar_select %p455, %s30, 1
        %s457 = smul.addr %s456, 6
        %s458 = smul.addr %s457, 8
        %s459 = scalar_lea.vmem %s6, %s458
        %s460 = smul.u32 2, %s29
        %p462 = scmp.eq.s32.totalorder %s30, 0
        // Predicated region
        $region61: #{tpu_custom_call.1} parent=47 // pred_check
          %p463 = pneg %p462
        $region62: #{tpu_custom_call.1} parent=47 // pred_check_branch
          %465 = sbr.rel (%p463) target = $region64
        $region63: #{tpu_custom_call.1} parent=47 // pred_region
          %v466 = vld [vmem:[%s448] sm:$0xff]
          %v467 = vld [vmem:[%s448 + $0x8] sm:$0xff]
          %468 = vst [vmem:[#allocation2] sm:$0xff] %v466
          %469 = vst [vmem:[#allocation2 + $0x8] sm:$0xff] %v467
        $region64: #{tpu_custom_call.1} parent=47 // pred_fallthru
          _
        %v470 = vld [vmem:[#allocation2] sm:$0xff]
        %v471 = vld [vmem:[#allocation2 + $0x8] sm:$0xff]
        %v472 = vpack.c.bf16 %v471, %v470
        %v473 = vld [vmem:[%s459] sm:$0xff]
        %v474 = vld [vmem:[%s459 + $0x8] sm:$0xff]
        %v475 = vld [vmem:[%s459 + $0x10] sm:$0xff]
        %v476 = vld [vmem:[%s459 + $0x18] sm:$0x1]
        %v477 = vld [vmem:[%s442] sm:$0x1]
        %v478 = vld [vmem:[%s442 + $0x1] sm:$0x1]
        %vm479 = vcmp.gt.f32.partialorder %v477, 0.5
        %vm480 = vcmp.gt.f32.partialorder %v478, 0.5
        %v481 = vld [vmem:[%s366] sm:$0xff]
        %v482 = vld [vmem:[%s366 + $0x8] sm:$0xf]
        %v483 = vld [vmem:[%s366 + $0xc] sm:$0xff]
        %v484 = vld [vmem:[%s366 + $0x14] sm:$0xf]
        %v485 = vld [vmem:[%s366 + $0x18] sm:$0xff]
        %v486 = vld [vmem:[%s366 + $0x20] sm:$0xf]
        %v487 = vld [vmem:[%s366 + $0x24] sm:$0xff]
        %v488 = vld [vmem:[%s366 + $0x2c] sm:$0xf]
        %v489 = vld [vmem:[%s366 + $0x30] sm:$0xff]
        %v490 = vld [vmem:[%s366 + $0x38] sm:$0xf]
        %v491 = vld [vmem:[%s366 + $0x3c] sm:$0xff]
        %v492 = vld [vmem:[%s366 + $0x44] sm:$0xf]
        %v493 = vld [vmem:[%s366 + $0x48] sm:$0xff]
        %v494 = vld [vmem:[%s366 + $0x50] sm:$0xf]
        %v495 = vld [vmem:[%s366 + $0x54] sm:$0xff]
        %v496 = vld [vmem:[%s366 + $0x5c] sm:$0xf]
        %v497 = vld [vmem:[%s366 + $0x60] sm:$0xff]
        %v498 = vld [vmem:[%s366 + $0x68] sm:$0xf]
        %v499 = vld [vmem:[%s366 + $0x6c] sm:$0xff]
        %v500 = vld [vmem:[%s366 + $0x74] sm:$0xf]
        %v501 = vld [vmem:[%s366 + $0x78] sm:$0xff]
        %v502 = vld [vmem:[%s366 + $0x80] sm:$0xf]
        %v503 = vld [vmem:[%s366 + $0x84] sm:$0xff]
        %v504 = vld [vmem:[%s366 + $0x8c] sm:$0xf]
        %v505 = vld [vmem:[%s366 + $0x90] sm:$0xff]
        %v506 = vld [vmem:[%s366 + $0x98] sm:$0xf]
        %v507 = vld [vmem:[%s366 + $0x9c] sm:$0xff]
        %v508 = vld [vmem:[%s366 + $0xa4] sm:$0xf]
        %v509 = vld [vmem:[%s366 + $0xa8] sm:$0xff]
        %v510 = vld [vmem:[%s366 + $0xb0] sm:$0xf]
        %v511 = vld [vmem:[%s366 + $0xb4] sm:$0xff]
        %v512 = vld [vmem:[%s366 + $0xbc] sm:$0xf]
        %v513 = vlaneseq
        %v514 = vshrl.u32 %v513, 7
        %v515 = vsub.s32 0, %v514
        %v516 = vrot.slane %v473, %v515
        %v517 = vlaneseq
        %v518 = vshrl.u32 %v517, 7
        %v519 = vsub.s32 0, %v518
        %v520 = vrot.slane %v474, %v519
        %v521 = vlaneseq
        %v522 = vshrl.u32 %v521, 7
        %v523 = vsub.s32 0, %v522
        %v524 = vrot.slane %v475, %v523
        %v557 = vunpack.c.l.b16 %v481
        %v558 = vunpack.c.h.b16 %v481
        %v559 = vunpack.c.l.b16 %v482
        %v560 = vunpack.c.l.b16 %v483
        %v561 = vunpack.c.h.b16 %v483
        %v562 = vunpack.c.l.b16 %v484
        %v563 = vunpack.c.l.b16 %v485
        %v564 = vunpack.c.h.b16 %v485
        %v565 = vunpack.c.l.b16 %v486
        %v566 = vunpack.c.l.b16 %v487
        %v567 = vunpack.c.h.b16 %v487
        %v568 = vunpack.c.l.b16 %v488
        %v569 = vunpack.c.l.b16 %v489
        %v570 = vunpack.c.h.b16 %v489
        %v571 = vunpack.c.l.b16 %v490
        %v572 = vunpack.c.l.b16 %v491
        %v573 = vunpack.c.h.b16 %v491
        %v574 = vunpack.c.l.b16 %v492
        %v575 = vunpack.c.l.b16 %v493
        %v576 = vunpack.c.h.b16 %v493
        %v577 = vunpack.c.l.b16 %v494
        %v578 = vunpack.c.l.b16 %v495
        %v579 = vunpack.c.h.b16 %v495
        %v580 = vunpack.c.l.b16 %v496
        %v581 = vunpack.c.l.b16 %v497
        %v582 = vunpack.c.h.b16 %v497
        %v583 = vunpack.c.l.b16 %v498
        %v584 = vunpack.c.l.b16 %v499
        %v585 = vunpack.c.h.b16 %v499
        %v586 = vunpack.c.l.b16 %v500
        %v587 = vunpack.c.l.b16 %v501
        %v588 = vunpack.c.h.b16 %v501
        %v589 = vunpack.c.l.b16 %v502
        %v590 = vunpack.c.l.b16 %v503
        %v591 = vunpack.c.h.b16 %v503
        %v592 = vunpack.c.l.b16 %v504
        %v593 = vunpack.c.l.b16 %v505
        %v594 = vunpack.c.h.b16 %v505
        %v595 = vunpack.c.l.b16 %v506
        %v596 = vunpack.c.l.b16 %v507
        %v597 = vunpack.c.h.b16 %v507
        %v598 = vunpack.c.l.b16 %v508
        %v599 = vunpack.c.l.b16 %v509
        %v600 = vunpack.c.h.b16 %v509
        %v601 = vunpack.c.l.b16 %v510
        %v602 = vunpack.c.l.b16 %v511
        %v603 = vunpack.c.h.b16 %v511
        %v604 = vunpack.c.l.b16 %v512
        %v605 = vpack.c.b16 %v560, %v557
        %v606 = vpack.c.b16 %v561, %v558
        %v607 = vpack.c.b16 %v562, %v559
        %v608 = vpack.c.b16 %v566, %v563
        %v609 = vpack.c.b16 %v567, %v564
        %v610 = vpack.c.b16 %v568, %v565
        %v611 = vpack.c.b16 %v572, %v569
        %v612 = vpack.c.b16 %v573, %v570
        %v613 = vpack.c.b16 %v574, %v571
        %v614 = vpack.c.b16 %v578, %v575
        %v615 = vpack.c.b16 %v579, %v576
        %v616 = vpack.c.b16 %v580, %v577
        %v617 = vpack.c.b16 %v584, %v581
        %v618 = vpack.c.b16 %v585, %v582
        %v619 = vpack.c.b16 %v586, %v583
        %v620 = vpack.c.b16 %v590, %v587
        %v621 = vpack.c.b16 %v591, %v588
        %v622 = vpack.c.b16 %v592, %v589
        %v623 = vpack.c.b16 %v596, %v593
        %v624 = vpack.c.b16 %v597, %v594
        %v625 = vpack.c.b16 %v598, %v595
        %v626 = vpack.c.b16 %v602, %v599
        %v627 = vpack.c.b16 %v603, %v600
        %v628 = vpack.c.b16 %v604, %v601
        %653 = vmatprep.subr.bf16.mxu0 %v627
        %654 = vmatpush1.bf16.msra.mxu0 %v626
        %655 = vmatprep.subr.bf16.mxu0 %v624
        %656 = vmatpush1.bf16.msra.mxu0 %v623
        %657 = vmatprep.subr.bf16.mxu0 %v621
        %658 = vmatpush1.bf16.msra.mxu0 %v620
        %659 = vmatprep.subr.bf16.mxu0 %v618
        %660 = vmatpush1.bf16.msra.mxu0 %v617
        %661 = vmatprep.subr.bf16.mxu0 %v615
        %662 = vmatpush1.bf16.msra.mxu0 %v614
        %663 = vmatprep.subr.bf16.mxu0 %v612
        %664 = vmatpush1.bf16.msra.mxu0 %v611
        %665 = vmatprep.subr.bf16.mxu0 %v609
        %666 = vmatpush1.bf16.msra.mxu0 %v608
        %667 = vmatprep.subr.bf16.mxu0 %v606
        %668 = vmatpush1.bf16.msra.mxu0 %v605
        %669 = vmatprep.subr.bf16.mxu0 0
        %670 = vmatpush2.bf16.msra.mxu0 0
        %671 = vmatprep.subr.bf16.mxu0 0
        %672 = vmatpush2.bf16.msra.mxu0 0
        %673 = vmatprep.subr.bf16.mxu0 0
        %674 = vmatpush2.bf16.msra.mxu0 0
        %675 = vmatprep.subr.bf16.mxu0 0
        %676 = vmatpush2.bf16.msra.mxu0 0
        %677 = vmatprep.subr.bf16.mxu0 0
        %678 = vmatpush2.bf16.msra.mxu0 0
        %679 = vmatprep.subr.bf16.mxu0 0
        %680 = vmatpush2.bf16.msra.mxu0 0
        %681 = vmatprep.subr.bf16.mxu0 0
        %682 = vmatpush2.bf16.msra.mxu0 0
        %683 = vmatprep.subr.bf16.mxu0 0
        %684 = vmatpush2.bf16.msra.mxu0 0
        %685 = vmatprep.mubr.bf16.mxu0 0
        %686 = vmatmul.mubr.bf16.gmra.mxu0 %v472
        %v687 = vpop.f32.mrf.mxu0
        %v688 = vadd.f32 %v516, %v687
        %v689 = vpop.f32.mrf.mxu0
        %v690 = vadd.f32 %v520, %v689
        %v691 = vpop.f32.mrf.mxu0
        %v692 = vadd.f32 %v516, %v691
        %v693 = vpop.f32.mrf.mxu0
        %v694 = vadd.f32 %v520, %v693
        %695 = vdwg.mxu0
        %696 = vmatprep.subr.bf16.mxu0 0
        %697 = vmatpush1.bf16.msra.mxu0 %v628
        %698 = vmatprep.subr.bf16.mxu0 0
        %699 = vmatpush1.bf16.msra.mxu0 %v625
        %700 = vmatprep.subr.bf16.mxu0 0
        %701 = vmatpush1.bf16.msra.mxu0 %v622
        %702 = vmatprep.subr.bf16.mxu0 0
        %703 = vmatpush1.bf16.msra.mxu0 %v619
        %704 = vmatprep.subr.bf16.mxu0 0
        %705 = vmatpush1.bf16.msra.mxu0 %v616
        %706 = vmatprep.subr.bf16.mxu0 0
        %707 = vmatpush1.bf16.msra.mxu0 %v613
        %708 = vmatprep.subr.bf16.mxu0 0
        %709 = vmatpush1.bf16.msra.mxu0 %v610
        %710 = vmatprep.subr.bf16.mxu0 0
        %711 = vmatpush1.bf16.msra.mxu0 %v607
        %712 = vmatprep.subr.bf16.mxu0 0
        %713 = vmatpush2.bf16.msra.mxu0 0
        %714 = vmatprep.subr.bf16.mxu0 0
        %715 = vmatpush2.bf16.msra.mxu0 0
        %716 = vmatprep.subr.bf16.mxu0 0
        %717 = vmatpush2.bf16.msra.mxu0 0
        %718 = vmatprep.subr.bf16.mxu0 0
        %719 = vmatpush2.bf16.msra.mxu0 0
        %720 = vmatprep.subr.bf16.mxu0 0
        %721 = vmatpush2.bf16.msra.mxu0 0
        %722 = vmatprep.subr.bf16.mxu0 0
        %723 = vmatpush2.bf16.msra.mxu0 0
        %724 = vmatprep.subr.bf16.mxu0 0
        %725 = vmatpush2.bf16.msra.mxu0 0
        %726 = vmatprep.subr.bf16.mxu0 0
        %727 = vmatpush2.bf16.msra.mxu0 0
        %728 = vmatprep.mubr.bf16.mxu0 0
        %729 = vmatmul.mubr.bf16.gmra.mxu0 %v472
        %v730 = vpop.f32.mrf.mxu0
        %v731 = vadd.f32 %v524, %v730
        %v732 = vpop.f32.mrf.mxu0
        %v733 = vpop.f32.mrf.mxu0
        %v734 = vadd.f32 %v524, %v733
        %v735 = vpop.f32.mrf.mxu0
        %736 = vdwg.mxu0
        %v737 = vpack.c.bf16 %v688, %v688
        %v738 = vpack.c.bf16 %v692, %v692
        %v739 = vpack.c.bf16 %v690, %v690
        %v740 = vpack.c.bf16 %v694, %v694
        %v741 = vpack.c.bf16 %v731, %v731
        %v742 = vpack.c.bf16 %v734, %v734
        %vm743 = vcmask 523264
        %v745 = vsel %vm743, %v737, 0
        %v748 = vsel %vm743, %v739, 0
        %750 = vmatprep.subr.bf16.mxu0 0
        %751 = vmatpush1.bf16.xpose.msra.mxu0 0
        %752 = vmatprep.subr.bf16.mxu0 0
        %753 = vmatpush1.bf16.xpose.msra.mxu0 0
        %754 = vmatprep.subr.bf16.mxu0 0
        %755 = vmatpush1.bf16.xpose.msra.mxu0 0
        %756 = vmatprep.subr.bf16.mxu0 0
        %757 = vmatpush1.bf16.xpose.msra.mxu0 0
        %758 = vmatprep.subr.bf16.mxu0 0
        %759 = vmatpush1.bf16.xpose.msra.mxu0 0
        %760 = vmatprep.subr.bf16.mxu0 0
        %761 = vmatpush1.bf16.xpose.msra.mxu0 0
        %762 = vmatprep.subr.bf16.mxu0 0
        %763 = vmatpush1.bf16.xpose.msra.mxu0 0
        %764 = vmatprep.subr.bf16.mxu0 0
        %765 = vmatpush1.bf16.xpose.msra.mxu0 %v748
        %766 = vmatprep.subr.bf16.mxu0 0
        %767 = vmatpush2.bf16.xpose.msra.mxu0 0
        %768 = vmatprep.subr.bf16.mxu0 0
        %769 = vmatpush2.bf16.xpose.msra.mxu0 0
        %770 = vmatprep.subr.bf16.mxu0 0
        %771 = vmatpush2.bf16.xpose.msra.mxu0 0
        %772 = vmatprep.subr.bf16.mxu0 0
        %773 = vmatpush2.bf16.xpose.msra.mxu0 0
        %774 = vmatprep.subr.bf16.mxu0 0
        %775 = vmatpush2.bf16.xpose.msra.mxu0 0
        %776 = vmatprep.subr.bf16.mxu0 0
        %777 = vmatpush2.bf16.xpose.msra.mxu0 0
        %778 = vmatprep.subr.bf16.mxu0 0
        %779 = vmatpush2.bf16.xpose.msra.mxu0 0
        %780 = vmatprep.subr.bf16.mxu0 0
        %781 = vmatpush2.bf16.xpose.msra.mxu0 0
        %782 = vmatprep.mubr.bf16.mxu0 0
        %783 = vmatmul.mubr.bf16.gmra.mxu0 %v745
        %v784 = vpop.f32.mrf.mxu0
        %v785 = vadd.f32 0.0, %v784
        %v786 = vpop.f32.mrf.mxu0
        %v787 = vpop.f32.mrf.mxu0
        %v788 = vpop.f32.mrf.mxu0
        %789 = vdwg.mxu0
        %v791 = vsel %vm743, %v738, 0
        %v794 = vsel %vm743, %v740, 0
        %796 = vmatprep.subr.bf16.mxu0 0
        %797 = vmatpush1.bf16.xpose.msra.mxu0 0
        %798 = vmatprep.subr.bf16.mxu0 0
        %799 = vmatpush1.bf16.xpose.msra.mxu0 0
        %800 = vmatprep.subr.bf16.mxu0 0
        %801 = vmatpush1.bf16.xpose.msra.mxu0 0
        %802 = vmatprep.subr.bf16.mxu0 0
        %803 = vmatpush1.bf16.xpose.msra.mxu0 0
        %804 = vmatprep.subr.bf16.mxu0 0
        %805 = vmatpush1.bf16.xpose.msra.mxu0 0
        %806 = vmatprep.subr.bf16.mxu0 0
        %807 = vmatpush1.bf16.xpose.msra.mxu0 0
        %808 = vmatprep.subr.bf16.mxu0 0
        %809 = vmatpush1.bf16.xpose.msra.mxu0 0
        %810 = vmatprep.subr.bf16.mxu0 0
        %811 = vmatpush1.bf16.xpose.msra.mxu0 %v794
        %812 = vmatprep.subr.bf16.mxu0 0
        %813 = vmatpush2.bf16.xpose.msra.mxu0 0
        %814 = vmatprep.subr.bf16.mxu0 0
        %815 = vmatpush2.bf16.xpose.msra.mxu0 0
        %816 = vmatprep.subr.bf16.mxu0 0
        %817 = vmatpush2.bf16.xpose.msra.mxu0 0
        %818 = vmatprep.subr.bf16.mxu0 0
        %819 = vmatpush2.bf16.xpose.msra.mxu0 0
        %820 = vmatprep.subr.bf16.mxu0 0
        %821 = vmatpush2.bf16.xpose.msra.mxu0 0
        %822 = vmatprep.subr.bf16.mxu0 0
        %823 = vmatpush2.bf16.xpose.msra.mxu0 0
        %824 = vmatprep.subr.bf16.mxu0 0
        %825 = vmatpush2.bf16.xpose.msra.mxu0 0
        %826 = vmatprep.subr.bf16.mxu0 0
        %827 = vmatpush2.bf16.xpose.msra.mxu0 0
        %828 = vmatprep.mubr.bf16.mxu0 0
        %829 = vmatmul.mubr.bf16.gmra.mxu0 %v791
        %v830 = vpop.f32.mrf.mxu0
        %v831 = vadd.f32 0.0, %v830
        %v832 = vpop.f32.mrf.mxu0
        %v833 = vpop.f32.mrf.mxu0
        %v834 = vpop.f32.mrf.mxu0
        %835 = vdwg.mxu0
        %v836 = vsel %vm479, 1, 0
        %v837 = vsel %vm480, 1, 0
        %v838 = vlaneseq
        %v839 = vshrl.u32 %v838, 7
        %v840 = vsub.s32 0, %v839
        %v841 = vrot.slane %v836, %v840
        %v842 = vlaneseq
        %v843 = vshrl.u32 %v842, 7
        %v844 = vsub.s32 0, %v843
        %v845 = vrot.slane %v837, %v844
        %vm846 = vcmp.eq.s32.totalorder %v841, 1
        %vm847 = vcmp.eq.s32.totalorder %v845, 1
        %v848 = vsel %vm846, %v785, -1e+30
        %v849 = vsel %vm847, %v831, -1e+30
        %vm850 = vcmask 64512
        %v851 = vsel %vm850, %v848, -inf
        %852 = vmax.xlane.f32.xlu0 %v851
        %v853 = vpop.xlane.xlu0 %852
        %v854 = vsel %vm850, %v849, -inf
        %855 = vmax.xlane.f32.xlu0 %v854
        %v856 = vpop.xlane.xlu0 %855
        %v857 = vsub.f32 %v848, %v853
        %v858 = vsub.f32 %v849, %v856
        %v859 = vmul.f32 %v857, 1.442695
        %v860 = vpow.pop %v859
        %v861 = vmul.f32 %v858, 1.442695
        %v862 = vpow.pop %v861
        %v863 = vsel %vm850, %v860, 0.0
        %864 = vadd.xlane.f32.xlu0 %v863
        %v865 = vpop.xlane.xlu0 %864
        %v866 = vsel %vm850, %v862, 0.0
        %867 = vadd.xlane.f32.xlu0 %v866
        %v868 = vpop.xlane.xlu0 %867
        %v869 = vrcp.pop %v865
        %v870 = vrcp.pop %v868
        %v871 = vmul.f32 %v860, %v869
        %v872 = vmul.f32 %v862, %v870
        %v873 = vpack.c.bf16 %v871, %v871
        %v874 = vpack.c.bf16 %v872, %v872
        %v876 = vsel %vm850, %v873, 0
        %vm878 = vcmask 1043456
        %v880 = vsel %vm878, %v741, 0
        %882 = vmatprep.subr.bf16.mxu0 0
        %883 = vmatpush1.bf16.msra.mxu0 0
        %884 = vmatprep.subr.bf16.mxu0 0
        %885 = vmatpush1.bf16.msra.mxu0 0
        %886 = vmatprep.subr.bf16.mxu0 0
        %887 = vmatpush1.bf16.msra.mxu0 0
        %888 = vmatprep.subr.bf16.mxu0 0
        %889 = vmatpush1.bf16.msra.mxu0 0
        %890 = vmatprep.subr.bf16.mxu0 0
        %891 = vmatpush1.bf16.msra.mxu0 0
        %892 = vmatprep.subr.bf16.mxu0 0
        %893 = vmatpush1.bf16.msra.mxu0 0
        %894 = vmatprep.subr.bf16.mxu0 0
        %895 = vmatpush1.bf16.msra.mxu0 0
        %896 = vmatprep.subr.bf16.mxu0 0
        %897 = vmatpush1.bf16.msra.mxu0 %v880
        %898 = vmatprep.subr.bf16.mxu0 0
        %899 = vmatpush2.bf16.msra.mxu0 0
        %900 = vmatprep.subr.bf16.mxu0 0
        %901 = vmatpush2.bf16.msra.mxu0 0
        %902 = vmatprep.subr.bf16.mxu0 0
        %903 = vmatpush2.bf16.msra.mxu0 0
        %904 = vmatprep.subr.bf16.mxu0 0
        %905 = vmatpush2.bf16.msra.mxu0 0
        %906 = vmatprep.subr.bf16.mxu0 0
        %907 = vmatpush2.bf16.msra.mxu0 0
        %908 = vmatprep.subr.bf16.mxu0 0
        %909 = vmatpush2.bf16.msra.mxu0 0
        %910 = vmatprep.subr.bf16.mxu0 0
        %911 = vmatpush2.bf16.msra.mxu0 0
        %912 = vmatprep.subr.bf16.mxu0 0
        %913 = vmatpush2.bf16.msra.mxu0 0
        %914 = vmatprep.mubr.bf16.mxu0 0
        %915 = vmatmul.mubr.bf16.gmra.mxu0 %v876
        %v916 = vpop.f32.mrf.mxu0
        %v917 = vadd.f32 0.0, %v916
        %v918 = vpop.f32.mrf.mxu0
        %v919 = vpop.f32.mrf.mxu0
        %v920 = vpop.f32.mrf.mxu0
        %921 = vdwg.mxu0
        %v923 = vsel %vm850, %v874, 0
        %v926 = vsel %vm878, %v742, 0
        %928 = vmatprep.subr.bf16.mxu0 0
        %929 = vmatpush1.bf16.msra.mxu0 0
        %930 = vmatprep.subr.bf16.mxu0 0
        %931 = vmatpush1.bf16.msra.mxu0 0
        %932 = vmatprep.subr.bf16.mxu0 0
        %933 = vmatpush1.bf16.msra.mxu0 0
        %934 = vmatprep.subr.bf16.mxu0 0
        %935 = vmatpush1.bf16.msra.mxu0 0
        %936 = vmatprep.subr.bf16.mxu0 0
        %937 = vmatpush1.bf16.msra.mxu0 0
        %938 = vmatprep.subr.bf16.mxu0 0
        %939 = vmatpush1.bf16.msra.mxu0 0
        %940 = vmatprep.subr.bf16.mxu0 0
        %941 = vmatpush1.bf16.msra.mxu0 0
        %942 = vmatprep.subr.bf16.mxu0 0
        %943 = vmatpush1.bf16.msra.mxu0 %v926
        %944 = vmatprep.subr.bf16.mxu0 0
        %945 = vmatpush2.bf16.msra.mxu0 0
        %946 = vmatprep.subr.bf16.mxu0 0
        %947 = vmatpush2.bf16.msra.mxu0 0
        %948 = vmatprep.subr.bf16.mxu0 0
        %949 = vmatpush2.bf16.msra.mxu0 0
        %950 = vmatprep.subr.bf16.mxu0 0
        %951 = vmatpush2.bf16.msra.mxu0 0
        %952 = vmatprep.subr.bf16.mxu0 0
        %953 = vmatpush2.bf16.msra.mxu0 0
        %954 = vmatprep.subr.bf16.mxu0 0
        %955 = vmatpush2.bf16.msra.mxu0 0
        %956 = vmatprep.subr.bf16.mxu0 0
        %957 = vmatpush2.bf16.msra.mxu0 0
        %958 = vmatprep.subr.bf16.mxu0 0
        %959 = vmatpush2.bf16.msra.mxu0 0
        %960 = vmatprep.mubr.bf16.mxu0 0
        %961 = vmatmul.mubr.bf16.gmra.mxu0 %v923
        %v962 = vpop.f32.mrf.mxu0
        %v963 = vadd.f32 0.0, %v962
        %v964 = vpop.f32.mrf.mxu0
        %v965 = vpop.f32.mrf.mxu0
        %v966 = vpop.f32.mrf.mxu0
        %967 = vdwg.mxu0
        %969 = vrot.lane.b32.xlu0 %v737, 64
        %v970 = vpop.permute.xlu0 %969
        %972 = vrot.lane.b32.xlu0 %v739, 64
        %v973 = vpop.permute.xlu0 %972
        %v975 = vsel %vm743, %v970, 0
        %v978 = vsel %vm743, %v973, 0
        %980 = vmatprep.subr.bf16.mxu0 0
        %981 = vmatpush1.bf16.xpose.msra.mxu0 0
        %982 = vmatprep.subr.bf16.mxu0 0
        %983 = vmatpush1.bf16.xpose.msra.mxu0 0
        %984 = vmatprep.subr.bf16.mxu0 0
        %985 = vmatpush1.bf16.xpose.msra.mxu0 0
        %986 = vmatprep.subr.bf16.mxu0 0
        %987 = vmatpush1.bf16.xpose.msra.mxu0 0
        %988 = vmatprep.subr.bf16.mxu0 0
        %989 = vmatpush1.bf16.xpose.msra.mxu0 0
        %990 = vmatprep.subr.bf16.mxu0 0
        %991 = vmatpush1.bf16.xpose.msra.mxu0 0
        %992 = vmatprep.subr.bf16.mxu0 0
        %993 = vmatpush1.bf16.xpose.msra.mxu0 0
        %994 = vmatprep.subr.bf16.mxu0 0
        %995 = vmatpush1.bf16.xpose.msra.mxu0 %v978
        %996 = vmatprep.subr.bf16.mxu0 0
        %997 = vmatpush2.bf16.xpose.msra.mxu0 0
        %998 = vmatprep.subr.bf16.mxu0 0
        %999 = vmatpush2.bf16.xpose.msra.mxu0 0
        %1000 = vmatprep.subr.bf16.mxu0 0
        %1001 = vmatpush2.bf16.xpose.msra.mxu0 0
        %1002 = vmatprep.subr.bf16.mxu0 0
        %1003 = vmatpush2.bf16.xpose.msra.mxu0 0
        %1004 = vmatprep.subr.bf16.mxu0 0
        %1005 = vmatpush2.bf16.xpose.msra.mxu0 0
        %1006 = vmatprep.subr.bf16.mxu0 0
        %1007 = vmatpush2.bf16.xpose.msra.mxu0 0
        %1008 = vmatprep.subr.bf16.mxu0 0
        %1009 = vmatpush2.bf16.xpose.msra.mxu0 0
        %1010 = vmatprep.subr.bf16.mxu0 0
        %1011 = vmatpush2.bf16.xpose.msra.mxu0 0
        %1012 = vmatprep.mubr.bf16.mxu0 0
        %1013 = vmatmul.mubr.bf16.gmra.mxu0 %v975
        %v1014 = vpop.f32.mrf.mxu0
        %v1015 = vadd.f32 0.0, %v1014
        %v1016 = vpop.f32.mrf.mxu0
        %v1017 = vpop.f32.mrf.mxu0
        %v1018 = vpop.f32.mrf.mxu0
        %1019 = vdwg.mxu0
        %1021 = vrot.lane.b32.xlu0 %v738, 64
        %v1022 = vpop.permute.xlu0 %1021
        %1024 = vrot.lane.b32.xlu0 %v740, 64
        %v1025 = vpop.permute.xlu0 %1024
        %v1027 = vsel %vm743, %v1022, 0
        %v1030 = vsel %vm743, %v1025, 0
        %1032 = vmatprep.subr.bf16.mxu0 0
        %1033 = vmatpush1.bf16.xpose.msra.mxu0 0
        %1034 = vmatprep.subr.bf16.mxu0 0
        %1035 = vmatpush1.bf16.xpose.msra.mxu0 0
        %1036 = vmatprep.subr.bf16.mxu0 0
        %1037 = vmatpush1.bf16.xpose.msra.mxu0 0
        %1038 = vmatprep.subr.bf16.mxu0 0
        %1039 = vmatpush1.bf16.xpose.msra.mxu0 0
        %1040 = vmatprep.subr.bf16.mxu0 0
        %1041 = vmatpush1.bf16.xpose.msra.mxu0 0
        %1042 = vmatprep.subr.bf16.mxu0 0
        %1043 = vmatpush1.bf16.xpose.msra.mxu0 0
        %1044 = vmatprep.subr.bf16.mxu0 0
        %1045 = vmatpush1.bf16.xpose.msra.mxu0 0
        %1046 = vmatprep.subr.bf16.mxu0 0
        %1047 = vmatpush1.bf16.xpose.msra.mxu0 %v1030
        %1048 = vmatprep.subr.bf16.mxu0 0
        %1049 = vmatpush2.bf16.xpose.msra.mxu0 0
        %1050 = vmatprep.subr.bf16.mxu0 0
        %1051 = vmatpush2.bf16.xpose.msra.mxu0 0
        %1052 = vmatprep.subr.bf16.mxu0 0
        %1053 = vmatpush2.bf16.xpose.msra.mxu0 0
        %1054 = vmatprep.subr.bf16.mxu0 0
        %1055 = vmatpush2.bf16.xpose.msra.mxu0 0
        %1056 = vmatprep.subr.bf16.mxu0 0
        %1057 = vmatpush2.bf16.xpose.msra.mxu0 0
        %1058 = vmatprep.subr.bf16.mxu0 0
        %1059 = vmatpush2.bf16.xpose.msra.mxu0 0
        %1060 = vmatprep.subr.bf16.mxu0 0
        %1061 = vmatpush2.bf16.xpose.msra.mxu0 0
        %1062 = vmatprep.subr.bf16.mxu0 0
        %1063 = vmatpush2.bf16.xpose.msra.mxu0 0
        %1064 = vmatprep.mubr.bf16.mxu0 0
        %1065 = vmatmul.mubr.bf16.gmra.mxu0 %v1027
        %v1066 = vpop.f32.mrf.mxu0
        %v1067 = vadd.f32 0.0, %v1066
        %v1068 = vpop.f32.mrf.mxu0
        %v1069 = vpop.f32.mrf.mxu0
        %v1070 = vpop.f32.mrf.mxu0
        %1071 = vdwg.mxu0
        %v1072 = vsel %vm846, %v1015, -1e+30
        %v1073 = vsel %vm847, %v1067, -1e+30
        %v1074 = vsel %vm850, %v1072, -inf
        %1075 = vmax.xlane.f32.xlu0 %v1074
        %v1076 = vpop.xlane.xlu0 %1075
        %v1077 = vsel %vm850, %v1073, -inf
        %1078 = vmax.xlane.f32.xlu0 %v1077
        %v1079 = vpop.xlane.xlu0 %1078
        %v1080 = vsub.f32 %v1072, %v1076
        %v1081 = vsub.f32 %v1073, %v1079
        %v1082 = vmul.f32 %v1080, 1.442695
        %v1083 = vpow.pop %v1082
        %v1084 = vmul.f32 %v1081, 1.442695
        %v1085 = vpow.pop %v1084
        %v1086 = vsel %vm850, %v1083, 0.0
        %1087 = vadd.xlane.f32.xlu0 %v1086
        %v1088 = vpop.xlane.xlu0 %1087
        %v1089 = vsel %vm850, %v1085, 0.0
        %1090 = vadd.xlane.f32.xlu0 %v1089
        %v1091 = vpop.xlane.xlu0 %1090
        %v1092 = vrcp.pop %v1088
        %v1093 = vrcp.pop %v1091
        %v1094 = vmul.f32 %v1083, %v1092
        %v1095 = vmul.f32 %v1085, %v1093
        %v1096 = vpack.c.bf16 %v1094, %v1094
        %v1097 = vpack.c.bf16 %v1095, %v1095
        %1099 = vrot.lane.b32.xlu0 %v741, 64
        %v1100 = vpop.permute.xlu0 %1099
        %v1102 = vsel %vm850, %v1096, 0
        %v1105 = vsel %vm878, %v1100, 0
        %1107 = vmatprep.subr.bf16.mxu0 0
        %1108 = vmatpush1.bf16.msra.mxu0 0
        %1109 = vmatprep.subr.bf16.mxu0 0
        %1110 = vmatpush1.bf16.msra.mxu0 0
        %1111 = vmatprep.subr.bf16.mxu0 0
        %1112 = vmatpush1.bf16.msra.mxu0 0
        %1113 = vmatprep.subr.bf16.mxu0 0
        %1114 = vmatpush1.bf16.msra.mxu0 0
        %1115 = vmatprep.subr.bf16.mxu0 0
        %1116 = vmatpush1.bf16.msra.mxu0 0
        %1117 = vmatprep.subr.bf16.mxu0 0
        %1118 = vmatpush1.bf16.msra.mxu0 0
        %1119 = vmatprep.subr.bf16.mxu0 0
        %1120 = vmatpush1.bf16.msra.mxu0 0
        %1121 = vmatprep.subr.bf16.mxu0 0
        %1122 = vmatpush1.bf16.msra.mxu0 %v1105
        %1123 = vmatprep.subr.bf16.mxu0 0
        %1124 = vmatpush2.bf16.msra.mxu0 0
        %1125 = vmatprep.subr.bf16.mxu0 0
        %1126 = vmatpush2.bf16.msra.mxu0 0
        %1127 = vmatprep.subr.bf16.mxu0 0
        %1128 = vmatpush2.bf16.msra.mxu0 0
        %1129 = vmatprep.subr.bf16.mxu0 0
        %1130 = vmatpush2.bf16.msra.mxu0 0
        %1131 = vmatprep.subr.bf16.mxu0 0
        %1132 = vmatpush2.bf16.msra.mxu0 0
        %1133 = vmatprep.subr.bf16.mxu0 0
        %1134 = vmatpush2.bf16.msra.mxu0 0
        %1135 = vmatprep.subr.bf16.mxu0 0
        %1136 = vmatpush2.bf16.msra.mxu0 0
        %1137 = vmatprep.subr.bf16.mxu0 0
        %1138 = vmatpush2.bf16.msra.mxu0 0
        %1139 = vmatprep.mubr.bf16.mxu0 0
        %1140 = vmatmul.mubr.bf16.gmra.mxu0 %v1102
        %v1141 = vpop.f32.mrf.mxu0
        %v1142 = vadd.f32 0.0, %v1141
        %v1143 = vpop.f32.mrf.mxu0
        %v1144 = vpop.f32.mrf.mxu0
        %v1145 = vpop.f32.mrf.mxu0
        %1146 = vdwg.mxu0
        %1148 = vrot.lane.b32.xlu0 %v742, 64
        %v1149 = vpop.permute.xlu0 %1148
        %v1151 = vsel %vm850, %v1097, 0
        %v1154 = vsel %vm878, %v1149, 0
        %1156 = vmatprep.subr.bf16.mxu0 0
        %1157 = vmatpush1.bf16.msra.mxu0 0
        %1158 = vmatprep.subr.bf16.mxu0 0
        %1159 = vmatpush1.bf16.msra.mxu0 0
        %1160 = vmatprep.subr.bf16.mxu0 0
        %1161 = vmatpush1.bf16.msra.mxu0 0
        %1162 = vmatprep.subr.bf16.mxu0 0
        %1163 = vmatpush1.bf16.msra.mxu0 0
        %1164 = vmatprep.subr.bf16.mxu0 0
        %1165 = vmatpush1.bf16.msra.mxu0 0
        %1166 = vmatprep.subr.bf16.mxu0 0
        %1167 = vmatpush1.bf16.msra.mxu0 0
        %1168 = vmatprep.subr.bf16.mxu0 0
        %1169 = vmatpush1.bf16.msra.mxu0 0
        %1170 = vmatprep.subr.bf16.mxu0 0
        %1171 = vmatpush1.bf16.msra.mxu0 %v1154
        %1172 = vmatprep.subr.bf16.mxu0 0
        %1173 = vmatpush2.bf16.msra.mxu0 0
        %1174 = vmatprep.subr.bf16.mxu0 0
        %1175 = vmatpush2.bf16.msra.mxu0 0
        %1176 = vmatprep.subr.bf16.mxu0 0
        %1177 = vmatpush2.bf16.msra.mxu0 0
        %1178 = vmatprep.subr.bf16.mxu0 0
        %1179 = vmatpush2.bf16.msra.mxu0 0
        %1180 = vmatprep.subr.bf16.mxu0 0
        %1181 = vmatpush2.bf16.msra.mxu0 0
        %1182 = vmatprep.subr.bf16.mxu0 0
        %1183 = vmatpush2.bf16.msra.mxu0 0
        %1184 = vmatprep.subr.bf16.mxu0 0
        %1185 = vmatpush2.bf16.msra.mxu0 0
        %1186 = vmatprep.subr.bf16.mxu0 0
        %1187 = vmatpush2.bf16.msra.mxu0 0
        %1188 = vmatprep.mubr.bf16.mxu0 0
        %1189 = vmatmul.mubr.bf16.gmra.mxu0 %v1151
        %v1190 = vpop.f32.mrf.mxu0
        %v1191 = vadd.f32 0.0, %v1190
        %v1192 = vpop.f32.mrf.mxu0
        %v1193 = vpop.f32.mrf.mxu0
        %v1194 = vpop.f32.mrf.mxu0
        %1195 = vdwg.mxu0
        %1198 = vrot.lane.b32.xlu0 %v1142, 64
        %v1199 = vpop.permute.xlu0 %1198
        %1200 = vrot.lane.b32.xlu0 %v1191, 64
        %v1201 = vpop.permute.xlu0 %1200
        %v1204 = vsel %vm743, %v917, %v1199
        %v1205 = vsel %vm743, %v963, %v1201
        %v1206 = vpack.c.bf16 %v1205, %v1204
        %v1207 = vld [vmem:[%s454] sm:$0xf]
        %v1208 = vld [vmem:[%s454 + $0x4] sm:$0xf]
        %v1209 = vld [vmem:[%s454 + $0x8] sm:$0xf]
        %v1210 = vld [vmem:[%s454 + $0xc] sm:$0xf]
        %v1211 = vld [vmem:[%s454 + $0x10] sm:$0xf]
        %v1212 = vld [vmem:[%s454 + $0x14] sm:$0xf]
        %v1213 = vld [vmem:[%s454 + $0x18] sm:$0xf]
        %v1214 = vld [vmem:[%s454 + $0x1c] sm:$0xf]
        %v1215 = vld [vmem:[%s454 + $0x20] sm:$0xf]
        %v1216 = vld [vmem:[%s454 + $0x24] sm:$0xf]
        %v1217 = vld [vmem:[%s454 + $0x28] sm:$0xf]
        %v1218 = vld [vmem:[%s454 + $0x2c] sm:$0xf]
        %v1219 = vld [vmem:[%s454 + $0x30] sm:$0xf]
        %v1220 = vld [vmem:[%s454 + $0x34] sm:$0xf]
        %v1221 = vld [vmem:[%s454 + $0x38] sm:$0xf]
        %v1222 = vld [vmem:[%s454 + $0x3c] sm:$0xf]
        %v1223 = vlaneseq
        %v1224 = vshrl.u32 %v1223, 7
        %v1225 = vsub.s32 1, %v1224
        %v1226 = vrot.slane %v473, %v1225
        %v1243 = vunpack.c.l.b16 %v1207
        %v1244 = vunpack.c.l.b16 %v1208
        %v1245 = vunpack.c.l.b16 %v1209
        %v1246 = vunpack.c.l.b16 %v1210
        %v1247 = vunpack.c.l.b16 %v1211
        %v1248 = vunpack.c.l.b16 %v1212
        %v1249 = vunpack.c.l.b16 %v1213
        %v1250 = vunpack.c.l.b16 %v1214
        %v1251 = vunpack.c.l.b16 %v1215
        %v1252 = vunpack.c.l.b16 %v1216
        %v1253 = vunpack.c.l.b16 %v1217
        %v1254 = vunpack.c.l.b16 %v1218
        %v1255 = vunpack.c.l.b16 %v1219
        %v1256 = vunpack.c.l.b16 %v1220
        %v1257 = vunpack.c.l.b16 %v1221
        %v1258 = vunpack.c.l.b16 %v1222
        %v1259 = vpack.c.b16 %v1244, %v1243
        %v1260 = vpack.c.b16 %v1246, %v1245
        %v1261 = vpack.c.b16 %v1248, %v1247
        %v1262 = vpack.c.b16 %v1250, %v1249
        %v1263 = vpack.c.b16 %v1252, %v1251
        %v1264 = vpack.c.b16 %v1254, %v1253
        %v1265 = vpack.c.b16 %v1256, %v1255
        %v1266 = vpack.c.b16 %v1258, %v1257
        %1275 = vmatprep.subr.bf16.mxu0 0
        %1276 = vmatpush1.bf16.msra.mxu0 %v1266
        %1277 = vmatprep.subr.bf16.mxu0 0
        %1278 = vmatpush1.bf16.msra.mxu0 %v1265
        %1279 = vmatprep.subr.bf16.mxu0 0
        %1280 = vmatpush1.bf16.msra.mxu0 %v1264
        %1281 = vmatprep.subr.bf16.mxu0 0
        %1282 = vmatpush1.bf16.msra.mxu0 %v1263
        %1283 = vmatprep.subr.bf16.mxu0 0
        %1284 = vmatpush1.bf16.msra.mxu0 %v1262
        %1285 = vmatprep.subr.bf16.mxu0 0
        %1286 = vmatpush1.bf16.msra.mxu0 %v1261
        %1287 = vmatprep.subr.bf16.mxu0 0
        %1288 = vmatpush1.bf16.msra.mxu0 %v1260
        %1289 = vmatprep.subr.bf16.mxu0 0
        %1290 = vmatpush1.bf16.msra.mxu0 %v1259
        %1291 = vmatprep.subr.bf16.mxu0 0
        %1292 = vmatpush2.bf16.msra.mxu0 0
        %1293 = vmatprep.subr.bf16.mxu0 0
        %1294 = vmatpush2.bf16.msra.mxu0 0
        %1295 = vmatprep.subr.bf16.mxu0 0
        %1296 = vmatpush2.bf16.msra.mxu0 0
        %1297 = vmatprep.subr.bf16.mxu0 0
        %1298 = vmatpush2.bf16.msra.mxu0 0
        %1299 = vmatprep.subr.bf16.mxu0 0
        %1300 = vmatpush2.bf16.msra.mxu0 0
        %1301 = vmatprep.subr.bf16.mxu0 0
        %1302 = vmatpush2.bf16.msra.mxu0 0
        %1303 = vmatprep.subr.bf16.mxu0 0
        %1304 = vmatpush2.bf16.msra.mxu0 0
        %1305 = vmatprep.subr.bf16.mxu0 0
        %1306 = vmatpush2.bf16.msra.mxu0 0
        %1307 = vmatprep.mubr.bf16.mxu0 0
        %1308 = vmatmul.mubr.bf16.gmra.mxu0 %v1206
        %v1309 = vpop.f32.mrf.mxu0
        %v1310 = vadd.f32 %v1226, %v1309
        %v1311 = vpop.f32.mrf.mxu0
        %v1312 = vpop.f32.mrf.mxu0
        %v1313 = vadd.f32 %v1226, %v1312
        %v1314 = vpop.f32.mrf.mxu0
        %1315 = vdwg.mxu0
        %v1316 = vadd.f32 %v470, %v1310
        %v1317 = vadd.f32 %v471, %v1313
        %1318 = vadd.xlane.f32.xlu0 %v1316
        %v1319 = vpop.xlane.xlu0 %1318
        %1320 = vadd.xlane.f32.xlu0 %v1317
        %v1321 = vpop.xlane.xlu0 %1320
        %v1322 = vrcp.pop 128.0
        %v1323 = vmul.f32 %v1319, %v1322
        %v1324 = vmul.f32 %v1321, %v1322
        %v1325 = vsub.f32 %v1316, %v1323
        %v1326 = vsub.f32 %v1317, %v1324
        %v1327 = vmul.f32 %v1325, %v1325
        %v1328 = vmul.f32 %v1326, %v1326
        %1329 = vadd.xlane.f32.xlu0 %v1327
        %v1330 = vpop.xlane.xlu0 %1329
        %1331 = vadd.xlane.f32.xlu0 %v1328
        %v1332 = vpop.xlane.xlu0 %1331
        %v1333 = vmul.f32 %v1330, %v1322
        %v1334 = vmul.f32 %v1332, %v1322
        %v1335 = vadd.f32 %v1333, 1e-05
        %v1336 = vadd.f32 %v1334, 1e-05
        %v1337 = vrsqrt.pop %v1335
        %v1338 = vrsqrt.pop %v1336
        %v1339 = vmul.f32 %v1325, %v1337
        %v1340 = vmul.f32 %v1326, %v1338
        %v1341 = vlaneseq
        %v1342 = vshrl.u32 %v1341, 7
        %v1343 = vsub.s32 5, %v1342
        %v1344 = vrot.slane %v473, %v1343
        %v1345 = vmul.f32 %v1339, %v1344
        %v1346 = vmul.f32 %v1340, %v1344
        %v1347 = vlaneseq
        %v1348 = vshrl.u32 %v1347, 7
        %v1349 = vsub.s32 6, %v1348
        %v1350 = vrot.slane %v473, %v1349
        %v1351 = vadd.f32 %v1345, %v1350
        %v1352 = vadd.f32 %v1346, %v1350
        %v1353 = vlaneseq
        %v1354 = vshrl.u32 %v1353, 7
        %v1355 = vsub.s32 2, %v1354
        %v1356 = vrot.slane %v473, %v1355
        %v1357 = vmul.f32 %v1351, %v1356
        %v1358 = vmul.f32 %v1352, %v1356
        %1359 = vadd.xlane.f32.xlu0 %v1357
        %v1360 = vpop.xlane.xlu0 %1359
        %1361 = vadd.xlane.f32.xlu0 %v1358
        %v1362 = vpop.xlane.xlu0 %1361
        %v1363 = vxor.u32 %v1360, 2147483648
        %v1364 = vxor.u32 %v1362, 2147483648
        %v1365 = vmul.f32 %v1363, 1.442695
        %v1366 = vpow.pop %v1365
        %v1367 = vmul.f32 %v1364, 1.442695
        %v1368 = vpow.pop %v1367
        %v1369 = vadd.f32 %v1366, 1.0
        %v1370 = vadd.f32 %v1368, 1.0
        %v1371 = vrcp.pop %v1369
        %v1372 = vmul.f32 1.0, %v1371
        %v1373 = vrcp.pop %v1370
        %v1374 = vmul.f32 1.0, %v1373
        %v1375 = vpack.c.bf16 %v1352, %v1351
        %v1376 = vld [vmem:[%s375] sm:$0xff]
        %v1377 = vld [vmem:[%s375 + $0x8] sm:$0xff]
        %v1378 = vld [vmem:[%s375 + $0x10] sm:$0xff]
        %v1379 = vld [vmem:[%s375 + $0x18] sm:$0xff]
        %v1380 = vld [vmem:[%s375 + $0x20] sm:$0xff]
        %v1381 = vld [vmem:[%s375 + $0x28] sm:$0xff]
        %v1382 = vld [vmem:[%s375 + $0x30] sm:$0xff]
        %v1383 = vld [vmem:[%s375 + $0x38] sm:$0xff]
        %v1384 = vld [vmem:[%s375 + $0x40] sm:$0xff]
        %v1385 = vld [vmem:[%s375 + $0x48] sm:$0xff]
        %v1386 = vld [vmem:[%s375 + $0x50] sm:$0xff]
        %v1387 = vld [vmem:[%s375 + $0x58] sm:$0xff]
        %v1388 = vld [vmem:[%s375 + $0x60] sm:$0xff]
        %v1389 = vld [vmem:[%s375 + $0x68] sm:$0xff]
        %v1390 = vld [vmem:[%s375 + $0x70] sm:$0xff]
        %v1391 = vld [vmem:[%s375 + $0x78] sm:$0xff]
        %v1392 = vlaneseq
        %v1393 = vshrl.u32 %v1392, 7
        %v1394 = vsub.s32 3, %v1393
        %v1395 = vrot.slane %v473, %v1394
        %v1396 = vlaneseq
        %v1397 = vshrl.u32 %v1396, 7
        %v1398 = vsub.s32 3, %v1397
        %v1399 = vrot.slane %v474, %v1398
        %v1416 = vunpack.c.l.b16 %v1376
        %v1417 = vunpack.c.h.b16 %v1376
        %v1418 = vunpack.c.l.b16 %v1377
        %v1419 = vunpack.c.h.b16 %v1377
        %v1420 = vunpack.c.l.b16 %v1378
        %v1421 = vunpack.c.h.b16 %v1378
        %v1422 = vunpack.c.l.b16 %v1379
        %v1423 = vunpack.c.h.b16 %v1379
        %v1424 = vunpack.c.l.b16 %v1380
        %v1425 = vunpack.c.h.b16 %v1380
        %v1426 = vunpack.c.l.b16 %v1381
        %v1427 = vunpack.c.h.b16 %v1381
        %v1428 = vunpack.c.l.b16 %v1382
        %v1429 = vunpack.c.h.b16 %v1382
        %v1430 = vunpack.c.l.b16 %v1383
        %v1431 = vunpack.c.h.b16 %v1383
        %v1432 = vunpack.c.l.b16 %v1384
        %v1433 = vunpack.c.h.b16 %v1384
        %v1434 = vunpack.c.l.b16 %v1385
        %v1435 = vunpack.c.h.b16 %v1385
        %v1436 = vunpack.c.l.b16 %v1386
        %v1437 = vunpack.c.h.b16 %v1386
        %v1438 = vunpack.c.l.b16 %v1387
        %v1439 = vunpack.c.h.b16 %v1387
        %v1440 = vunpack.c.l.b16 %v1388
        %v1441 = vunpack.c.h.b16 %v1388
        %v1442 = vunpack.c.l.b16 %v1389
        %v1443 = vunpack.c.h.b16 %v1389
        %v1444 = vunpack.c.l.b16 %v1390
        %v1445 = vunpack.c.h.b16 %v1390
        %v1446 = vunpack.c.l.b16 %v1391
        %v1447 = vunpack.c.h.b16 %v1391
        %v1448 = vpack.c.b16 %v1418, %v1416
        %v1449 = vpack.c.b16 %v1419, %v1417
        %v1450 = vpack.c.b16 %v1422, %v1420
        %v1451 = vpack.c.b16 %v1423, %v1421
        %v1452 = vpack.c.b16 %v1426, %v1424
        %v1453 = vpack.c.b16 %v1427, %v1425
        %v1454 = vpack.c.b16 %v1430, %v1428
        %v1455 = vpack.c.b16 %v1431, %v1429
        %v1456 = vpack.c.b16 %v1434, %v1432
        %v1457 = vpack.c.b16 %v1435, %v1433
        %v1458 = vpack.c.b16 %v1438, %v1436
        %v1459 = vpack.c.b16 %v1439, %v1437
        %v1460 = vpack.c.b16 %v1442, %v1440
        %v1461 = vpack.c.b16 %v1443, %v1441
        %v1462 = vpack.c.b16 %v1446, %v1444
        %v1463 = vpack.c.b16 %v1447, %v1445
        %1480 = vmatprep.subr.bf16.mxu0 %v1463
        %1481 = vmatpush1.bf16.msra.mxu0 %v1462
        %1482 = vmatprep.subr.bf16.mxu0 %v1461
        %1483 = vmatpush1.bf16.msra.mxu0 %v1460
        %1484 = vmatprep.subr.bf16.mxu0 %v1459
        %1485 = vmatpush1.bf16.msra.mxu0 %v1458
        %1486 = vmatprep.subr.bf16.mxu0 %v1457
        %1487 = vmatpush1.bf16.msra.mxu0 %v1456
        %1488 = vmatprep.subr.bf16.mxu0 %v1455
        %1489 = vmatpush1.bf16.msra.mxu0 %v1454
        %1490 = vmatprep.subr.bf16.mxu0 %v1453
        %1491 = vmatpush1.bf16.msra.mxu0 %v1452
        %1492 = vmatprep.subr.bf16.mxu0 %v1451
        %1493 = vmatpush1.bf16.msra.mxu0 %v1450
        %1494 = vmatprep.subr.bf16.mxu0 %v1449
        %1495 = vmatpush1.bf16.msra.mxu0 %v1448
        %1496 = vmatprep.subr.bf16.mxu0 0
        %1497 = vmatpush2.bf16.msra.mxu0 0
        %1498 = vmatprep.subr.bf16.mxu0 0
        %1499 = vmatpush2.bf16.msra.mxu0 0
        %1500 = vmatprep.subr.bf16.mxu0 0
        %1501 = vmatpush2.bf16.msra.mxu0 0
        %1502 = vmatprep.subr.bf16.mxu0 0
        %1503 = vmatpush2.bf16.msra.mxu0 0
        %1504 = vmatprep.subr.bf16.mxu0 0
        %1505 = vmatpush2.bf16.msra.mxu0 0
        %1506 = vmatprep.subr.bf16.mxu0 0
        %1507 = vmatpush2.bf16.msra.mxu0 0
        %1508 = vmatprep.subr.bf16.mxu0 0
        %1509 = vmatpush2.bf16.msra.mxu0 0
        %1510 = vmatprep.subr.bf16.mxu0 0
        %1511 = vmatpush2.bf16.msra.mxu0 0
        %1512 = vmatprep.mubr.bf16.mxu0 0
        %1513 = vmatmul.mubr.bf16.gmra.mxu0 %v1375
        %v1514 = vpop.f32.mrf.mxu0
        %v1515 = vadd.f32 %v1395, %v1514
        %v1516 = vpop.f32.mrf.mxu0
        %v1517 = vadd.f32 %v1399, %v1516
        %v1518 = vpop.f32.mrf.mxu0
        %v1519 = vadd.f32 %v1395, %v1518
        %v1520 = vpop.f32.mrf.mxu0
        %v1521 = vadd.f32 %v1399, %v1520
        %1522 = vdwg.mxu0
        %v1523 = vmul.f32 %v1515, %v1372
        %v1524 = vmul.f32 %v1517, %v1372
        %v1525 = vmul.f32 %v1519, %v1374
        %v1526 = vmul.f32 %v1521, %v1374
        %v1527 = vmax.f32 %v1523, 0.0
        %v1528 = vmax.f32 %v1524, 0.0
        %v1529 = vmax.f32 %v1525, 0.0
        %v1530 = vmax.f32 %v1526, 0.0
        %v1531 = vpack.c.bf16 %v1529, %v1527
        %v1532 = vpack.c.bf16 %v1530, %v1528
        %v1533 = vld [vmem:[%s384] sm:$0xf]
        %v1534 = vld [vmem:[%s384 + $0x4] sm:$0xf]
        %v1535 = vld [vmem:[%s384 + $0x8] sm:$0xf]
        %v1536 = vld [vmem:[%s384 + $0xc] sm:$0xf]
        %v1537 = vld [vmem:[%s384 + $0x10] sm:$0xf]
        %v1538 = vld [vmem:[%s384 + $0x14] sm:$0xf]
        %v1539 = vld [vmem:[%s384 + $0x18] sm:$0xf]
        %v1540 = vld [vmem:[%s384 + $0x1c] sm:$0xf]
        %v1541 = vld [vmem:[%s384 + $0x20] sm:$0xf]
        %v1542 = vld [vmem:[%s384 + $0x24] sm:$0xf]
        %v1543 = vld [vmem:[%s384 + $0x28] sm:$0xf]
        %v1544 = vld [vmem:[%s384 + $0x2c] sm:$0xf]
        %v1545 = vld [vmem:[%s384 + $0x30] sm:$0xf]
        %v1546 = vld [vmem:[%s384 + $0x34] sm:$0xf]
        %v1547 = vld [vmem:[%s384 + $0x38] sm:$0xf]
        %v1548 = vld [vmem:[%s384 + $0x3c] sm:$0xf]
        %v1549 = vld [vmem:[%s384 + $0x40] sm:$0xf]
        %v1550 = vld [vmem:[%s384 + $0x44] sm:$0xf]
        %v1551 = vld [vmem:[%s384 + $0x48] sm:$0xf]
        %v1552 = vld [vmem:[%s384 + $0x4c] sm:$0xf]
        %v1553 = vld [vmem:[%s384 + $0x50] sm:$0xf]
        %v1554 = vld [vmem:[%s384 + $0x54] sm:$0xf]
        %v1555 = vld [vmem:[%s384 + $0x58] sm:$0xf]
        %v1556 = vld [vmem:[%s384 + $0x5c] sm:$0xf]
        %v1557 = vld [vmem:[%s384 + $0x60] sm:$0xf]
        %v1558 = vld [vmem:[%s384 + $0x64] sm:$0xf]
        %v1559 = vld [vmem:[%s384 + $0x68] sm:$0xf]
        %v1560 = vld [vmem:[%s384 + $0x6c] sm:$0xf]
        %v1561 = vld [vmem:[%s384 + $0x70] sm:$0xf]
        %v1562 = vld [vmem:[%s384 + $0x74] sm:$0xf]
        %v1563 = vld [vmem:[%s384 + $0x78] sm:$0xf]
        %v1564 = vld [vmem:[%s384 + $0x7c] sm:$0xf]
        %v1565 = vlaneseq
        %v1566 = vshrl.u32 %v1565, 7
        %v1567 = vsub.s32 4, %v1566
        %v1568 = vrot.slane %v473, %v1567
        %v1601 = vunpack.c.l.b16 %v1533
        %v1602 = vunpack.c.l.b16 %v1534
        %v1603 = vunpack.c.l.b16 %v1535
        %v1604 = vunpack.c.l.b16 %v1536
        %v1605 = vunpack.c.l.b16 %v1537
        %v1606 = vunpack.c.l.b16 %v1538
        %v1607 = vunpack.c.l.b16 %v1539
        %v1608 = vunpack.c.l.b16 %v1540
        %v1609 = vunpack.c.l.b16 %v1541
        %v1610 = vunpack.c.l.b16 %v1542
        %v1611 = vunpack.c.l.b16 %v1543
        %v1612 = vunpack.c.l.b16 %v1544
        %v1613 = vunpack.c.l.b16 %v1545
        %v1614 = vunpack.c.l.b16 %v1546
        %v1615 = vunpack.c.l.b16 %v1547
        %v1616 = vunpack.c.l.b16 %v1548
        %v1617 = vunpack.c.l.b16 %v1549
        %v1618 = vunpack.c.l.b16 %v1550
        %v1619 = vunpack.c.l.b16 %v1551
        %v1620 = vunpack.c.l.b16 %v1552
        %v1621 = vunpack.c.l.b16 %v1553
        %v1622 = vunpack.c.l.b16 %v1554
        %v1623 = vunpack.c.l.b16 %v1555
        %v1624 = vunpack.c.l.b16 %v1556
        %v1625 = vunpack.c.l.b16 %v1557
        %v1626 = vunpack.c.l.b16 %v1558
        %v1627 = vunpack.c.l.b16 %v1559
        %v1628 = vunpack.c.l.b16 %v1560
        %v1629 = vunpack.c.l.b16 %v1561
        %v1630 = vunpack.c.l.b16 %v1562
        %v1631 = vunpack.c.l.b16 %v1563
        %v1632 = vunpack.c.l.b16 %v1564
        %v1633 = vpack.c.b16 %v1602, %v1601
        %v1634 = vpack.c.b16 %v1604, %v1603
        %v1635 = vpack.c.b16 %v1606, %v1605
        %v1636 = vpack.c.b16 %v1608, %v1607
        %v1637 = vpack.c.b16 %v1610, %v1609
        %v1638 = vpack.c.b16 %v1612, %v1611
        %v1639 = vpack.c.b16 %v1614, %v1613
        %v1640 = vpack.c.b16 %v1616, %v1615
        %v1641 = vpack.c.b16 %v1618, %v1617
        %v1642 = vpack.c.b16 %v1620, %v1619
        %v1643 = vpack.c.b16 %v1622, %v1621
        %v1644 = vpack.c.b16 %v1624, %v1623
        %v1645 = vpack.c.b16 %v1626, %v1625
        %v1646 = vpack.c.b16 %v1628, %v1627
        %v1647 = vpack.c.b16 %v1630, %v1629
        %v1648 = vpack.c.b16 %v1632, %v1631
        %1665 = vmatprep.subr.bf16.mxu0 0
        %1666 = vmatpush1.bf16.msra.mxu0 %v1640
        %1667 = vmatprep.subr.bf16.mxu0 0
        %1668 = vmatpush1.bf16.msra.mxu0 %v1639
        %1669 = vmatprep.subr.bf16.mxu0 0
        %1670 = vmatpush1.bf16.msra.mxu0 %v1638
        %1671 = vmatprep.subr.bf16.mxu0 0
        %1672 = vmatpush1.bf16.msra.mxu0 %v1637
        %1673 = vmatprep.subr.bf16.mxu0 0
        %1674 = vmatpush1.bf16.msra.mxu0 %v1636
        %1675 = vmatprep.subr.bf16.mxu0 0
        %1676 = vmatpush1.bf16.msra.mxu0 %v1635
        %1677 = vmatprep.subr.bf16.mxu0 0
        %1678 = vmatpush1.bf16.msra.mxu0 %v1634
        %1679 = vmatprep.subr.bf16.mxu0 0
        %1680 = vmatpush1.bf16.msra.mxu0 %v1633
        %1681 = vmatprep.subr.bf16.mxu0 0
        %1682 = vmatpush2.bf16.msra.mxu0 %v1648
        %1683 = vmatprep.subr.bf16.mxu0 0
        %1684 = vmatpush2.bf16.msra.mxu0 %v1647
        %1685 = vmatprep.subr.bf16.mxu0 0
        %1686 = vmatpush2.bf16.msra.mxu0 %v1646
        %1687 = vmatprep.subr.bf16.mxu0 0
        %1688 = vmatpush2.bf16.msra.mxu0 %v1645
        %1689 = vmatprep.subr.bf16.mxu0 0
        %1690 = vmatpush2.bf16.msra.mxu0 %v1644
        %1691 = vmatprep.subr.bf16.mxu0 0
        %1692 = vmatpush2.bf16.msra.mxu0 %v1643
        %1693 = vmatprep.subr.bf16.mxu0 0
        %1694 = vmatpush2.bf16.msra.mxu0 %v1642
        %1695 = vmatprep.subr.bf16.mxu0 0
        %1696 = vmatpush2.bf16.msra.mxu0 %v1641
        %1697 = vmatprep.mubr.bf16.mxu0 %v1532
        %1698 = vmatmul.mubr.bf16.gmra.mxu0 %v1531
        %v1699 = vpop.f32.mrf.mxu0
        %v1700 = vadd.f32 %v1568, %v1699
        %v1701 = vpop.f32.mrf.mxu0
        %v1702 = vpop.f32.mrf.mxu0
        %v1703 = vadd.f32 %v1568, %v1702
        %v1704 = vpop.f32.mrf.mxu0
        %1705 = vdwg.mxu0
        %v1706 = vadd.f32 %v1351, %v1700
        %v1707 = vadd.f32 %v1352, %v1703
        %1708 = vadd.xlane.f32.xlu0 %v1706
        %v1709 = vpop.xlane.xlu0 %1708
        %1710 = vadd.xlane.f32.xlu0 %v1707
        %v1711 = vpop.xlane.xlu0 %1710
        %v1712 = vmul.f32 %v1709, %v1322
        %v1713 = vmul.f32 %v1711, %v1322
        %v1714 = vsub.f32 %v1706, %v1712
        %v1715 = vsub.f32 %v1707, %v1713
        %v1716 = vmul.f32 %v1714, %v1714
        %v1717 = vmul.f32 %v1715, %v1715
        %1718 = vadd.xlane.f32.xlu0 %v1716
        %v1719 = vpop.xlane.xlu0 %1718
        %1720 = vadd.xlane.f32.xlu0 %v1717
        %v1721 = vpop.xlane.xlu0 %1720
        %v1722 = vmul.f32 %v1719, %v1322
        %v1723 = vmul.f32 %v1721, %v1322
        %v1724 = vadd.f32 %v1722, 1e-05
        %v1725 = vadd.f32 %v1723, 1e-05
        %v1726 = vrsqrt.pop %v1724
        %v1727 = vrsqrt.pop %v1725
        %v1728 = vmul.f32 %v1714, %v1726
        %v1729 = vmul.f32 %v1715, %v1727
        %v1730 = vlaneseq
        %v1731 = vshrl.u32 %v1730, 7
        %v1732 = vsub.s32 7, %v1731
        %v1733 = vrot.slane %v473, %v1732
        %v1734 = vmul.f32 %v1728, %v1733
        %v1735 = vmul.f32 %v1729, %v1733
        %v1736 = vlaneseq
        %v1737 = vshrl.u32 %v1736, 7
        %v1738 = vsub.s32 0, %v1737
        %v1739 = vrot.slane %v476, %v1738
        %v1740 = vadd.f32 %v1734, %v1739
        %v1741 = vadd.f32 %v1735, %v1739
        %1742 = vst [vmem:[#allocation2] sm:$0xff] %v1740
        %1743 = vst [vmem:[#allocation2 + $0x8] sm:$0xff] %v1741
        %p1744 = scmp.eq.s32.totalorder %s30, 1
        // Predicated region
        $region65: #{tpu_custom_call.1} parent=47 // pred_check
          %p1745 = pneg %p1744
        $region66: #{tpu_custom_call.1} parent=47 // pred_check_branch
          %1747 = sbr.rel (%p1745) target = $region68
        $region67: #{tpu_custom_call.1} parent=47 // pred_region
          %1748 = vst [vmem:[#allocation9] sm:$0xff] %v1740
          %1749 = vst [vmem:[#allocation9 + $0x8] sm:$0xff] %v1741
        $region68: #{tpu_custom_call.1} parent=47 // pred_fallthru
          _
        // Predicated region
        $region69: #{tpu_custom_call.1} parent=47 // pred_check
          %p1750 = pneg %p237
        $region70: #{tpu_custom_call.1} parent=47 // pred_check_branch
          %1752 = sbr.rel (%p1750) target = $region72
        $region71: #{tpu_custom_call.1} parent=47 // pred_region
          %s1753 = smul.u32 2, %s29
          %s1755 = ssub.s32 256, 256
          %1756 = vsyncadd [#allocation5], %s1755
          %s1757 = smul.addr %s1753, 128
          %s1758 = scalar_lea.hbm %s7, %s1757
          %s1759 = sshll.u32 [#allocation9], 4
          %s1760 = int_to_ptr.vmem [resolvable:$true] %s1759
          %1765 = dma.vmem_to_hbm [thread:$0]  %s1760, 256, %s1758, [#allocation5], 128, 128, 8
        $region72: #{tpu_custom_call.1} parent=47 // pred_fallthru
          _
        // Predicated region
        $region73: #{tpu_custom_call.1} parent=47 // pred_check
          %p1766 = pneg %p237
        $region74: #{tpu_custom_call.1} parent=47 // pred_check_branch
          %1768 = sbr.rel (%p1766) target = $region76
        $region75: #{tpu_custom_call.1} parent=47 // pred_region
          %1769 = dma.done [#allocation5], 256
        $region76: #{tpu_custom_call.1} parent=47 // pred_fallthru
          _
      $region48: #{tpu_custom_call.1} parent=5 // pred_fallthru
        _
      %p1770 = scmp.le.s32.totalorder 2, %s20
      // Predicated region
      $region77: #{tpu_custom_call.1} parent=5 // pred_check
        %p1771 = pneg %p1770
      $region78: #{tpu_custom_call.1} parent=5 // pred_check_branch
        %1773 = sbr.rel (%p1771) target = $region80
      $region79: #{tpu_custom_call.1} parent=5 // pred_region
        %s1774 = ssub.s32 %s20, 2
      $region80: #{tpu_custom_call.1} parent=5 // pred_fallthru
        _
    $region6: #{tpu_custom_call.1} parent=1 // loop_footer
      %s24 = sadd.s32 1, %s20
    $region7: #{tpu_custom_call.1} parent=1 // loop_footer_branch
      %19 = sbr.rel target = $region3
    $region8: #{tpu_custom_call.1} parent=1 // loop_exit
      _
    %1775 = vsyncpa [#allocation4], 1
    %s1776 = scalar_lea.sflag [#allocation4], 1
    %1777 = vsyncpa %s1776, 1
    %1778 = vsyncpa [#allocation7], 1
    %s1779 = scalar_lea.sflag [#allocation7], 1
    %1780 = vsyncpa %s1779, 1
    %1781 = vsyncpa [#allocation5], 1
    %s1782 = scalar_lea.sflag [#allocation5], 1
    %1783 = vsyncpa %s1782, 1

</llo_original>
